<compile_context>
chip_gen: v5e
topology: v5e:2x2
jax: 0.10.0
libtpu: 0.0.40
codegen_flags: <defaults>
</compile_context>

<pallas_src>
import math

import jax
import jax.numpy as jnp
from jax import lax
from jax.experimental import pallas as pl
from jax.experimental.pallas import tpu as pltpu


# ----------------------------------------------------------------------------
# In-kernel helpers (no reshapes of minor dims, no vector int div/mod).
# ----------------------------------------------------------------------------
def _dot(a, b):
    return jnp.dot(a, b, preferred_element_type=jnp.float32)


def _repeat_rows_selector(big, small, inner):
    """(big, small) f32 with L[m, a] = 1 iff m // inner == a  (big = small*inner).
    (L @ Y)[m, :] = Y[m // inner, :]  -> repeats each row of Y `inner` times."""
    m = lax.broadcasted_iota(jnp.int32, (big, small), 0)
    a = lax.broadcasted_iota(jnp.int32, (big, small), 1)
    lo = a * inner
    cond = (m >= lo) & (m < lo + inner)
    return jnp.where(cond, jnp.float32(1), jnp.float32(0))


def _repeat_cols_selector(small, big, inner):
    """(small, big) f32 with R[p, n] = 1 iff n // inner == p.
    (X @ R)[:, n] = X[:, n // inner]  -> repeats each column `inner` times."""
    p = lax.broadcasted_iota(jnp.int32, (small, big), 0)
    n = lax.broadcasted_iota(jnp.int32, (small, big), 1)
    lo = p * inner
    cond = (n >= lo) & (n < lo + inner)
    return jnp.where(cond, jnp.float32(1), jnp.float32(0))


def _kron_pair(a_re, a_im, b_re, b_im):
    """Complex Kronecker product: K[(i,j),(p,q)] = a[i,p] * b[j,q].

    a (outer factor, (Ra,Ca)) is expanded via 0/1 selector matmuls (row/col
    repeat); b (inner factor, (Rb,Cb)) is expanded via concatenation tiling.
    Returns (K_re, K_im) of shape (Ra*Rb, Ca*Cb).  All ops are MXU dots,
    concatenates and elementwise -- everything lowers cleanly in Mosaic.
    """
    ra, ca = a_re.shape
    rb, cb = b_re.shape
    big_r, big_c = ra * rb, ca * cb

    lsel = _repeat_rows_selector(big_r, ra, rb)     # (big_r, ra)
    rsel = _repeat_cols_selector(ca, big_c, cb)     # (ca, big_c)
    a_re_e = _dot(_dot(lsel, a_re), rsel)           # a[m//rb, n//cb]
    a_im_e = _dot(_dot(lsel, a_im), rsel)

    def _tile(x):                                   # x[m%rb, n%cb]
        if ra > 1:
            x = jnp.concatenate([x] * ra, axis=0)
        if ca > 1:
            x = jnp.concatenate([x] * ca, axis=1)
        return x

    b_re_e = _tile(b_re)
    b_im_e = _tile(b_im)

    k_re = a_re_e * b_re_e - a_im_e * b_im_e
    k_im = a_re_e * b_im_e + a_im_e * b_re_e
    return k_re, k_im


# ----------------------------------------------------------------------------
# Fused kernel.  Inputs carry (re, im) stacked on a leading dim of 2.
#   f0_ref : (2, TILE_A, r0)   tile of factor 0 rows
#   f1_ref : (2, s1, r1)
#   c_ref  : (2, r0*r1, r2*r3) matricized core
#   f2t_ref: (2, r2, s2)       factor 2 transposed
#   f3t_ref: (2, r3, s3)       factor 3 transposed
#   out_ref: (TILE_M, 2*s2*s3) = [out_re | out_im]   (lane-dense)
#   d_ref  : VMEM scratch (2*r0*r1, 2*s2*s3)  -- stacked-real D = C @ kron(f2,f3)^T
# ----------------------------------------------------------------------------
def _tucker_fused_kernel(f0_ref, f1_ref, c_ref, f2t_ref, f3t_ref, out_ref, d_ref):
    # One-time D build (rank-sized), kept resident in VMEM across all M-tiles.
    @pl.when(pl.program_id(0) == 0)
    def _():
        k1t_re, k1t_im = _kron_pair(f2t_ref[0], f2t_ref[1],
                                    f3t_ref[0], f3t_ref[1])        # (r2*r3, s2*s3)
        c_re, c_im = c_ref[0], c_ref[1]                            # (K, P)
        d_re = _dot(c_re, k1t_re) - _dot(c_im, k1t_im)             # (K, N)
        d_im = _dot(c_re, k1t_im) + _dot(c_im, k1t_re)
        d_ref[...] = jnp.concatenate(
            [jnp.concatenate([d_re, d_im], axis=1),
             jnp.concatenate([-d_im, d_re], axis=1)], axis=0)      # (2K, 2N)

    # Per-tile: build K0s rows in registers and do ONE stacked-real MXU dot.
    k0_re, k0_im = _kron_pair(f0_ref[0], f0_ref[1],
                              f1_ref[0], f1_ref[1])                # (TILE_M, K)
    k0s = jnp.concatenate([k0_re, k0_im], axis=1)                  # (TILE_M, 2K)
    out_ref[...] = _dot(k0s, d_ref[...])                           # (TILE_M, 2N)


def _pick_tile_a(s0, s1, max_rows):
    """Rows per grid step = tile_a * s1.  tile_a must divide s0; when tiling,
    require tile_a % 8 == 0 so both the f0 block and the out block satisfy the
    f32 sublane constraint.  Fall back to the whole axis if nothing fits."""
    if s0 * s1 <= max_rows:
        return s0
    for d in range(s0, 0, -1):
        if s0 % d == 0 and d % 8 == 0 and d * s1 <= max_rows:
            return d
    return s0


# ----------------------------------------------------------------------------
# Wrapper: tucker 'reconstructed' forward.  ('factorized' / non-tucker paths of
# the original module are pure parameter passthroughs and need no kernel.)
# ----------------------------------------------------------------------------
def decomposable_parameters_forward(core, factors, *, max_tile_rows=1024):
    assert core.shape[-1] == 2 and len(factors) == 4
    r0, r1, r2, r3 = core.shape[:-1]
    s0, s1, s2, s3 = (f.shape[0] for f in factors)
    K, P, N = r0 * r1, r2 * r3, s2 * s3
    M = s0 * s1

    # Parameter-sized layout plumbing only (few KB) -- all O(M*N) work and all
    # Kronecker / complex stacking happens inside the kernel.
    c_ri = jnp.stack([core[..., 0].reshape(K, P), core[..., 1].reshape(K, P)])
    f0_ri = jnp.stack([factors[0][..., 0], factors[0][..., 1]])        # (2, s0, r0)
    f1_ri = jnp.stack([factors[1][..., 0], factors[1][..., 1]])        # (2, s1, r1)
    f2t_ri = jnp.stack([factors[2][..., 0].T, factors[2][..., 1].T])   # (2, r2, s2)
    f3t_ri = jnp.stack([factors[3][..., 0].T, factors[3][..., 1].T])   # (2, r3, s3)

    tile_a = _pick_tile_a(s0, s1, max_tile_rows)
    tile_m = tile_a * s1
    grid = (s0 // tile_a,)

    flops = (2 * M * (2 * K) * (2 * N)          # per-tile stacked dot, all tiles
             + 4 * 2 * K * P * N                # one-time D = C @ K1T
             + 8 * 2 * P * N * max(r2, s2)      # K1T selector expansions (approx)
             + 8 * 2 * M * K * max(r0, 4))      # K0 selector expansions (approx)
    bytes_accessed = 4 * (c_ri.size + f0_ri.size + f1_ri.size + f2t_ri.size
                          + f3t_ri.size + M * 2 * N)

    out_s = pl.pallas_call(
        _tucker_fused_kernel,
        out_shape=jax.ShapeDtypeStruct((M, 2 * N), jnp.float32),
        grid_spec=pltpu.PrefetchScalarGridSpec(
            num_scalar_prefetch=0,
            grid=grid,
            in_specs=[
                pl.BlockSpec((2, tile_a, r0), lambda i: (0, i, 0)),
                pl.BlockSpec((2, s1, r1), lambda i: (0, 0, 0)),
                pl.BlockSpec((2, K, P), lambda i: (0, 0, 0)),
                pl.BlockSpec((2, r2, s2), lambda i: (0, 0, 0)),
                pl.BlockSpec((2, r3, s3), lambda i: (0, 0, 0)),
            ],
            out_specs=pl.BlockSpec((tile_m, 2 * N), lambda i: (i, 0)),
            scratch_shapes=[pltpu.VMEM((2 * K, 2 * N), jnp.float32)],
        ),
        compiler_params=pltpu.CompilerParams(
            # "arbitrary": the D scratch is filled once at step 0 and reused by
            # later steps; a megacore "parallel" split would skip that init on
            # the second core.  (Switch to a per-step D rebuild to use parallel
            # on v7x.)
            dimension_semantics=("arbitrary",),
        ),
        cost_estimate=pl.CostEstimate(
            flops=flops, transcendentals=0, bytes_accessed=bytes_accessed),
    )(f0_ri, f1_ri, c_ri, f2t_ri, f3t_ri)

    out_re = out_s[:, :N].reshape(s0, s1, s2, s3)
    out_im = out_s[:, N:].reshape(s0, s1, s2, s3)
    return lax.complex(out_re, out_im)


# ----------------------------------------------------------------------------
# Parameter init (deterministic xavier_uniform_ applied to the raw (..., 2)
# real-view tensors, matching the PyTorch module's nn.init usage).
# ----------------------------------------------------------------------------
def xavier_uniform(key, shape):
    receptive = 1
    for d in shape[2:]:
        receptive *= d
    fan_in = shape[1] * receptive
    fan_out = shape[0] * receptive
    bound = math.sqrt(6.0 / (fan_in + fan_out))
    return jax.random.uniform(key, shape, jnp.float32, minval=-bound, maxval=bound)


def make_params(key, shape, rank):
    """core: rank + [2]; factors[i]: (shape[i], rank[i], 2)  (last dim = re/im)."""
    keys = jax.random.split(key, 1 + len(shape))
    core = xavier_uniform(keys[0], tuple(rank) + (2,))
    factors = [xavier_uniform(k, (s, r, 2)) for k, s, r in zip(keys[1:], shape, rank)]
    return core, factors


# ----------------------------------------------------------------------------
# Pure-JAX complex reference (matches the PyTorch chain of tensordots +
# permute(3,2,1,0)): out[a,b,c,d] = sum f0[a,r] f1[b,s] f2[c,t] f3[d,u] C[r,s,t,u].
# ----------------------------------------------------------------------------
def reference_forward(core, factors):
    core_c = lax.complex(core[..., 0], core[..., 1])
    fc = [lax.complex(fk[..., 0], fk[..., 1]) for fk in factors]
    return jnp.einsum("ar,bs,ct,du,rstu->abcd", fc[0], fc[1], fc[2], fc[3], core_c)


if __name__ == "__main__":
    # Small conv-weight-like decomposable parameter: shape = (C_out, C_in, kH, kW)
    shape = (8, 8, 16, 16)
    rank = [4, 4, 8, 8]

    key = jax.random.PRNGKey(0)
    core, factors = make_params(key, shape, rank)

    fwd = jax.jit(decomposable_parameters_forward)
    out = jax.block_until_ready(fwd(core, factors))

    assert out.shape == shape, out.shape
    assert jnp.iscomplexobj(out)

    ref = jax.block_until_ready(reference_forward(core, factors))
    err = float(jnp.max(jnp.abs(out - ref)))
    scale = float(jnp.max(jnp.abs(ref))) + 1e-12
    # f32 MXU matmul chains (kernel) vs XLA complex einsum (reference): allow a
    # modest tolerance; any indexing/algebra bug would produce O(1) errors.
    if err / scale > 5e-3:
        raise AssertionError(f"mismatch vs reference: rel err {err / scale}")

    print("KERNEL_OK")
</pallas_src>

<mosaic_0001>
module attributes {stable_mosaic.version = 11 : i64} {
  func.func @_tucker_fused_kernel(%arg0: i32, %arg1: memref<2x8x4xf32, #tpu.memory_space<vmem>>, %arg2: memref<2x8x4xf32, #tpu.memory_space<vmem>>, %arg3: memref<2x16x64xf32, #tpu.memory_space<vmem>>, %arg4: memref<2x8x16xf32, #tpu.memory_space<vmem>>, %arg5: memref<2x8x16xf32, #tpu.memory_space<vmem>>, %arg6: memref<64x512xf32, #tpu.memory_space<vmem>>, %arg7: memref<32x512xf32, #tpu.memory_space<vmem>>) attributes {dimension_semantics = [#tpu.dimension_semantics<arbitrary>], iteration_bounds = array<i64: 1>, scalar_prefetch = 0 : i64, scratch_operands = 1 : i64, tpu.core_type = #tpu.core_type<tc>, window_params = [{transform_indices = @transform_0, window_bounds = array<i64: 2, 8, 4>}, {pipeline_mode = #tpu.pipeline_mode<synchronous>, transform_indices = @transform_1, window_bounds = array<i64: 2, 8, 4>}, {pipeline_mode = #tpu.pipeline_mode<synchronous>, transform_indices = @transform_2, window_bounds = array<i64: 2, 16, 64>}, {pipeline_mode = #tpu.pipeline_mode<synchronous>, transform_indices = @transform_3, window_bounds = array<i64: 2, 8, 16>}, {pipeline_mode = #tpu.pipeline_mode<synchronous>, transform_indices = @transform_4, window_bounds = array<i64: 2, 8, 16>}, {transform_indices = @transform_5, window_bounds = array<i64: 64, 512>}]} {
    %c0_i32 = arith.constant 0 : i32
    %0 = arith.cmpi eq, %arg0, %c0_i32 : i32
    %1 = arith.extui %0 : i1 to i32
    %c0_i32_0 = arith.constant 0 : i32
    %2 = arith.cmpi ne, %1, %c0_i32_0 : i32
    scf.if %2 {
      %c0_25 = arith.constant 0 : index
      %c0_26 = arith.constant 0 : index
      %c0_27 = arith.constant 0 : index
      %53 = vector.load %arg4[%c0_25, %c0_26, %c0_27] : memref<2x8x16xf32, #tpu.memory_space<vmem>>, vector<1x8x16xf32>
      %54 = vector.shape_cast %53 : vector<1x8x16xf32> to vector<8x16xf32>
      %c1_28 = arith.constant 1 : index
      %c0_29 = arith.constant 0 : index
      %c0_30 = arith.constant 0 : index
      %55 = vector.load %arg4[%c1_28, %c0_29, %c0_30] : memref<2x8x16xf32, #tpu.memory_space<vmem>>, vector<1x8x16xf32>
      %56 = vector.shape_cast %55 : vector<1x8x16xf32> to vector<8x16xf32>
      %c0_31 = arith.constant 0 : index
      %c0_32 = arith.constant 0 : index
      %c0_33 = arith.constant 0 : index
      %57 = vector.load %arg5[%c0_31, %c0_32, %c0_33] : memref<2x8x16xf32, #tpu.memory_space<vmem>>, vector<1x8x16xf32>
      %58 = vector.shape_cast %57 : vector<1x8x16xf32> to vector<8x16xf32>
      %c1_34 = arith.constant 1 : index
      %c0_35 = arith.constant 0 : index
      %c0_36 = arith.constant 0 : index
      %59 = vector.load %arg5[%c1_34, %c0_35, %c0_36] : memref<2x8x16xf32, #tpu.memory_space<vmem>>, vector<1x8x16xf32>
      %60 = vector.shape_cast %59 : vector<1x8x16xf32> to vector<8x16xf32>
      %61 = tpu.iota {dimensions = array<i32: 0>} : vector<64x8xi32>
      %62 = tpu.iota {dimensions = array<i32: 1>} : vector<64x8xi32>
      %c8_i32_37 = arith.constant 8 : i32
      %63 = vector.broadcast %c8_i32_37 : i32 to vector<64x8xi32>
      %64 = arith.muli %62, %63 : vector<64x8xi32>
      %65 = arith.cmpi sge, %61, %64 : vector<64x8xi32>
      %c8_i32_38 = arith.constant 8 : i32
      %66 = vector.broadcast %c8_i32_38 : i32 to vector<64x8xi32>
      %67 = arith.addi %64, %66 : vector<64x8xi32>
      %68 = arith.cmpi slt, %61, %67 : vector<64x8xi32>
      %69 = arith.andi %65, %68 : vector<64x8xi1>
      %cst_39 = arith.constant 1.000000e+00 : f32
      %cst_40 = arith.constant 0.000000e+00 : f32
      %70 = vector.broadcast %cst_39 : f32 to vector<64x8xf32>
      %71 = vector.broadcast %cst_40 : f32 to vector<64x8xf32>
      %72 = arith.select %69, %70, %71 : vector<64x8xi1>, vector<64x8xf32>
      %73 = tpu.iota {dimensions = array<i32: 0>} : vector<16x256xi32>
      %74 = tpu.iota {dimensions = array<i32: 1>} : vector<16x256xi32>
      %c16_i32 = arith.constant 16 : i32
      %75 = vector.broadcast %c16_i32 : i32 to vector<16x256xi32>
      %76 = arith.muli %73, %75 : vector<16x256xi32>
      %77 = arith.cmpi sge, %74, %76 : vector<16x256xi32>
      %c16_i32_41 = arith.constant 16 : i32
      %78 = vector.broadcast %c16_i32_41 : i32 to vector<16x256xi32>
      %79 = arith.addi %76, %78 : vector<16x256xi32>
      %80 = arith.cmpi slt, %74, %79 : vector<16x256xi32>
      %81 = arith.andi %77, %80 : vector<16x256xi1>
      %cst_42 = arith.constant 1.000000e+00 : f32
      %cst_43 = arith.constant 0.000000e+00 : f32
      %82 = vector.broadcast %cst_42 : f32 to vector<16x256xf32>
      %83 = vector.broadcast %cst_43 : f32 to vector<16x256xf32>
      %84 = arith.select %81, %82, %83 : vector<16x256xi1>, vector<16x256xf32>
      %cst_44 = arith.constant dense<0.000000e+00> : vector<64x16xf32>
      %85 = tpu.matmul %72, %54, %cst_44 {dimension_numbers = #tpu.dot_dimension_numbers<[1], [0], [0], [1], [0, 0, 1, 1], [], []>} : vector<64x8xf32>, vector<8x16xf32>, vector<64x16xf32> -> vector<64x16xf32>
      %cst_45 = arith.constant dense<0.000000e+00> : vector<64x256xf32>
      %86 = tpu.matmul %85, %84, %cst_45 {dimension_numbers = #tpu.dot_dimension_numbers<[1], [0], [0], [1], [0, 0, 1, 1], [], []>} : vector<64x16xf32>, vector<16x256xf32>, vector<64x256xf32> -> vector<64x256xf32>
      %cst_46 = arith.constant dense<0.000000e+00> : vector<64x16xf32>
      %87 = tpu.matmul %72, %56, %cst_46 {dimension_numbers = #tpu.dot_dimension_numbers<[1], [0], [0], [1], [0, 0, 1, 1], [], []>} : vector<64x8xf32>, vector<8x16xf32>, vector<64x16xf32> -> vector<64x16xf32>
      %cst_47 = arith.constant dense<0.000000e+00> : vector<64x256xf32>
      %88 = tpu.matmul %87, %84, %cst_47 {dimension_numbers = #tpu.dot_dimension_numbers<[1], [0], [0], [1], [0, 0, 1, 1], [], []>} : vector<64x16xf32>, vector<16x256xf32>, vector<64x256xf32> -> vector<64x256xf32>
      %89 = tpu.concatenate %58, %58, %58, %58, %58, %58, %58, %58 in 0 : vector<8x16xf32>, vector<8x16xf32>, vector<8x16xf32>, vector<8x16xf32>, vector<8x16xf32>, vector<8x16xf32>, vector<8x16xf32>, vector<8x16xf32> -> vector<64x16xf32>
      %90 = tpu.concatenate %89, %89, %89, %89, %89, %89, %89, %89, %89, %89, %89, %89, %89, %89, %89, %89 in 1 : vector<64x16xf32>, vector<64x16xf32>, vector<64x16xf32>, vector<64x16xf32>, vector<64x16xf32>, vector<64x16xf32>, vector<64x16xf32>, vector<64x16xf32>, vector<64x16xf32>, vector<64x16xf32>, vector<64x16xf32>, vector<64x16xf32>, vector<64x16xf32>, vector<64x16xf32>, vector<64x16xf32>, vector<64x16xf32> -> vector<64x256xf32>
      %91 = tpu.concatenate %60, %60, %60, %60, %60, %60, %60, %60 in 0 : vector<8x16xf32>, vector<8x16xf32>, vector<8x16xf32>, vector<8x16xf32>, vector<8x16xf32>, vector<8x16xf32>, vector<8x16xf32>, vector<8x16xf32> -> vector<64x16xf32>
      %92 = tpu.concatenate %91, %91, %91, %91, %91, %91, %91, %91, %91, %91, %91, %91, %91, %91, %91, %91 in 1 : vector<64x16xf32>, vector<64x16xf32>, vector<64x16xf32>, vector<64x16xf32>, vector<64x16xf32>, vector<64x16xf32>, vector<64x16xf32>, vector<64x16xf32>, vector<64x16xf32>, vector<64x16xf32>, vector<64x16xf32>, vector<64x16xf32>, vector<64x16xf32>, vector<64x16xf32>, vector<64x16xf32>, vector<64x16xf32> -> vector<64x256xf32>
      %93 = arith.mulf %86, %90 : vector<64x256xf32>
      %94 = arith.mulf %88, %92 : vector<64x256xf32>
      %95 = arith.subf %93, %94 : vector<64x256xf32>
      %96 = arith.mulf %86, %92 : vector<64x256xf32>
      %97 = arith.mulf %88, %90 : vector<64x256xf32>
      %98 = arith.addf %96, %97 : vector<64x256xf32>
      %c0_48 = arith.constant 0 : index
      %c0_49 = arith.constant 0 : index
      %c0_50 = arith.constant 0 : index
      %99 = vector.load %arg3[%c0_48, %c0_49, %c0_50] : memref<2x16x64xf32, #tpu.memory_space<vmem>>, vector<1x16x64xf32>
      %100 = vector.shape_cast %99 : vector<1x16x64xf32> to vector<16x64xf32>
      %c1_51 = arith.constant 1 : index
      %c0_52 = arith.constant 0 : index
      %c0_53 = arith.constant 0 : index
      %101 = vector.load %arg3[%c1_51, %c0_52, %c0_53] : memref<2x16x64xf32, #tpu.memory_space<vmem>>, vector<1x16x64xf32>
      %102 = vector.shape_cast %101 : vector<1x16x64xf32> to vector<16x64xf32>
      %cst_54 = arith.constant dense<0.000000e+00> : vector<16x256xf32>
      %103 = tpu.matmul %100, %95, %cst_54 {dimension_numbers = #tpu.dot_dimension_numbers<[1], [0], [0], [1], [0, 0, 1, 1], [], []>} : vector<16x64xf32>, vector<64x256xf32>, vector<16x256xf32> -> vector<16x256xf32>
      %cst_55 = arith.constant dense<0.000000e+00> : vector<16x256xf32>
      %104 = tpu.matmul %102, %98, %cst_55 {dimension_numbers = #tpu.dot_dimension_numbers<[1], [0], [0], [1], [0, 0, 1, 1], [], []>} : vector<16x64xf32>, vector<64x256xf32>, vector<16x256xf32> -> vector<16x256xf32>
      %105 = arith.subf %103, %104 : vector<16x256xf32>
      %cst_56 = arith.constant dense<0.000000e+00> : vector<16x256xf32>
      %106 = tpu.matmul %100, %98, %cst_56 {dimension_numbers = #tpu.dot_dimension_numbers<[1], [0], [0], [1], [0, 0, 1, 1], [], []>} : vector<16x64xf32>, vector<64x256xf32>, vector<16x256xf32> -> vector<16x256xf32>
      %cst_57 = arith.constant dense<0.000000e+00> : vector<16x256xf32>
      %107 = tpu.matmul %102, %95, %cst_57 {dimension_numbers = #tpu.dot_dimension_numbers<[1], [0], [0], [1], [0, 0, 1, 1], [], []>} : vector<16x64xf32>, vector<64x256xf32>, vector<16x256xf32> -> vector<16x256xf32>
      %108 = arith.addf %106, %107 : vector<16x256xf32>
      %109 = tpu.concatenate %105, %108 in 1 : vector<16x256xf32>, vector<16x256xf32> -> vector<16x512xf32>
      %cst_58 = arith.constant 0.000000e+00 : f32
      %110 = vector.broadcast %cst_58 : f32 to vector<16x256xf32>
      %111 = arith.subf %110, %108 : vector<16x256xf32>
      %112 = tpu.concatenate %111, %105 in 1 : vector<16x256xf32>, vector<16x256xf32> -> vector<16x512xf32>
      %113 = tpu.concatenate %109, %112 in 0 : vector<16x512xf32>, vector<16x512xf32> -> vector<32x512xf32>
      %c0_59 = arith.constant 0 : index
      %c0_60 = arith.constant 0 : index
      %114 = vector.load %arg7[%c0_59, %c0_60] : memref<32x512xf32, #tpu.memory_space<vmem>>, vector<32x512xf32>
      tpu.vector_store %arg7[%c0_59, %c0_60], %113 {strides = array<i32>} : memref<32x512xf32, #tpu.memory_space<vmem>>, vector<32x512xf32>,
    } else {
    }
    %c0 = arith.constant 0 : index
    %c0_1 = arith.constant 0 : index
    %c0_2 = arith.constant 0 : index
    %3 = vector.load %arg1[%c0, %c0_1, %c0_2] : memref<2x8x4xf32, #tpu.memory_space<vmem>>, vector<1x8x4xf32>
    %4 = vector.shape_cast %3 : vector<1x8x4xf32> to vector<8x4xf32>
    %c1 = arith.constant 1 : index
    %c0_3 = arith.constant 0 : index
    %c0_4 = arith.constant 0 : index
    %5 = vector.load %arg1[%c1, %c0_3, %c0_4] : memref<2x8x4xf32, #tpu.memory_space<vmem>>, vector<1x8x4xf32>
    %6 = vector.shape_cast %5 : vector<1x8x4xf32> to vector<8x4xf32>
    %c0_5 = arith.constant 0 : index
    %c0_6 = arith.constant 0 : index
    %c0_7 = arith.constant 0 : index
    %7 = vector.load %arg2[%c0_5, %c0_6, %c0_7] : memref<2x8x4xf32, #tpu.memory_space<vmem>>, vector<1x8x4xf32>
    %8 = vector.shape_cast %7 : vector<1x8x4xf32> to vector<8x4xf32>
    %c1_8 = arith.constant 1 : index
    %c0_9 = arith.constant 0 : index
    %c0_10 = arith.constant 0 : index
    %9 = vector.load %arg2[%c1_8, %c0_9, %c0_10] : memref<2x8x4xf32, #tpu.memory_space<vmem>>, vector<1x8x4xf32>
    %10 = vector.shape_cast %9 : vector<1x8x4xf32> to vector<8x4xf32>
    %11 = tpu.iota {dimensions = array<i32: 0>} : vector<64x8xi32>
    %12 = tpu.iota {dimensions = array<i32: 1>} : vector<64x8xi32>
    %c8_i32 = arith.constant 8 : i32
    %13 = vector.broadcast %c8_i32 : i32 to vector<64x8xi32>
    %14 = arith.muli %12, %13 : vector<64x8xi32>
    %15 = arith.cmpi sge, %11, %14 : vector<64x8xi32>
    %c8_i32_11 = arith.constant 8 : i32
    %16 = vector.broadcast %c8_i32_11 : i32 to vector<64x8xi32>
    %17 = arith.addi %14, %16 : vector<64x8xi32>
    %18 = arith.cmpi slt, %11, %17 : vector<64x8xi32>
    %19 = arith.andi %15, %18 : vector<64x8xi1>
    %cst = arith.constant 1.000000e+00 : f32
    %cst_12 = arith.constant 0.000000e+00 : f32
    %20 = vector.broadcast %cst : f32 to vector<64x8xf32>
    %21 = vector.broadcast %cst_12 : f32 to vector<64x8xf32>
    %22 = arith.select %19, %20, %21 : vector<64x8xi1>, vector<64x8xf32>
    %23 = tpu.iota {dimensions = array<i32: 0>} : vector<4x16xi32>
    %24 = tpu.iota {dimensions = array<i32: 1>} : vector<4x16xi32>
    %c4_i32 = arith.constant 4 : i32
    %25 = vector.broadcast %c4_i32 : i32 to vector<4x16xi32>
    %26 = arith.muli %23, %25 : vector<4x16xi32>
    %27 = arith.cmpi sge, %24, %26 : vector<4x16xi32>
    %c4_i32_13 = arith.constant 4 : i32
    %28 = vector.broadcast %c4_i32_13 : i32 to vector<4x16xi32>
    %29 = arith.addi %26, %28 : vector<4x16xi32>
    %30 = arith.cmpi slt, %24, %29 : vector<4x16xi32>
    %31 = arith.andi %27, %30 : vector<4x16xi1>
    %cst_14 = arith.constant 1.000000e+00 : f32
    %cst_15 = arith.constant 0.000000e+00 : f32
    %32 = vector.broadcast %cst_14 : f32 to vector<4x16xf32>
    %33 = vector.broadcast %cst_15 : f32 to vector<4x16xf32>
    %34 = arith.select %31, %32, %33 : vector<4x16xi1>, vector<4x16xf32>
    %cst_16 = arith.constant dense<0.000000e+00> : vector<64x4xf32>
    %35 = tpu.matmul %22, %4, %cst_16 {dimension_numbers = #tpu.dot_dimension_numbers<[1], [0], [0], [1], [0, 0, 1, 1], [], []>} : vector<64x8xf32>, vector<8x4xf32>, vector<64x4xf32> -> vector<64x4xf32>
    %cst_17 = arith.constant dense<0.000000e+00> : vector<64x16xf32>
    %36 = tpu.matmul %35, %34, %cst_17 {dimension_numbers = #tpu.dot_dimension_numbers<[1], [0], [0], [1], [0, 0, 1, 1], [], []>} : vector<64x4xf32>, vector<4x16xf32>, vector<64x16xf32> -> vector<64x16xf32>
    %cst_18 = arith.constant dense<0.000000e+00> : vector<64x4xf32>
    %37 = tpu.matmul %22, %6, %cst_18 {dimension_numbers = #tpu.dot_dimension_numbers<[1], [0], [0], [1], [0, 0, 1, 1], [], []>} : vector<64x8xf32>, vector<8x4xf32>, vector<64x4xf32> -> vector<64x4xf32>
    %cst_19 = arith.constant dense<0.000000e+00> : vector<64x16xf32>
    %38 = tpu.matmul %37, %34, %cst_19 {dimension_numbers = #tpu.dot_dimension_numbers<[1], [0], [0], [1], [0, 0, 1, 1], [], []>} : vector<64x4xf32>, vector<4x16xf32>, vector<64x16xf32> -> vector<64x16xf32>
    %39 = tpu.concatenate %8, %8, %8, %8, %8, %8, %8, %8 in 0 : vector<8x4xf32>, vector<8x4xf32>, vector<8x4xf32>, vector<8x4xf32>, vector<8x4xf32>, vector<8x4xf32>, vector<8x4xf32>, vector<8x4xf32> -> vector<64x4xf32>
    %40 = tpu.concatenate %39, %39, %39, %39 in 1 : vector<64x4xf32>, vector<64x4xf32>, vector<64x4xf32>, vector<64x4xf32> -> vector<64x16xf32>
    %41 = tpu.concatenate %10, %10, %10, %10, %10, %10, %10, %10 in 0 : vector<8x4xf32>, vector<8x4xf32>, vector<8x4xf32>, vector<8x4xf32>, vector<8x4xf32>, vector<8x4xf32>, vector<8x4xf32>, vector<8x4xf32> -> vector<64x4xf32>
    %42 = tpu.concatenate %41, %41, %41, %41 in 1 : vector<64x4xf32>, vector<64x4xf32>, vector<64x4xf32>, vector<64x4xf32> -> vector<64x16xf32>
    %43 = arith.mulf %36, %40 : vector<64x16xf32>
    %44 = arith.mulf %38, %42 : vector<64x16xf32>
    %45 = arith.subf %43, %44 : vector<64x16xf32>
    %46 = arith.mulf %36, %42 : vector<64x16xf32>
    %47 = arith.mulf %38, %40 : vector<64x16xf32>
    %48 = arith.addf %46, %47 : vector<64x16xf32>
    %49 = tpu.concatenate %45, %48 in 1 : vector<64x16xf32>, vector<64x16xf32> -> vector<64x32xf32>
    %c0_20 = arith.constant 0 : index
    %c0_21 = arith.constant 0 : index
    %50 = vector.load %arg7[%c0_20, %c0_21] : memref<32x512xf32, #tpu.memory_space<vmem>>, vector<32x512xf32>
    %cst_22 = arith.constant dense<0.000000e+00> : vector<64x512xf32>
    %51 = tpu.matmul %49, %50, %cst_22 {dimension_numbers = #tpu.dot_dimension_numbers<[1], [0], [0], [1], [0, 0, 1, 1], [], []>} : vector<64x32xf32>, vector<32x512xf32>, vector<64x512xf32> -> vector<64x512xf32>
    %c0_23 = arith.constant 0 : index
    %c0_24 = arith.constant 0 : index
    %52 = vector.load %arg6[%c0_23, %c0_24] : memref<64x512xf32, #tpu.memory_space<vmem>>, vector<64x512xf32>
    tpu.vector_store %arg6[%c0_23, %c0_24], %51 {strides = array<i32>} : memref<64x512xf32, #tpu.memory_space<vmem>>, vector<64x512xf32>,
    return
  }
  func.func @transform_0(%arg0: i32) -> (i32, i32, i32) {
    %c0_i32 = arith.constant 0 : i32
    %c0_i32_0 = arith.constant 0 : i32
    %c0_i32_1 = arith.constant 0 : i32
    return %c0_i32, %arg0, %c0_i32_0 : i32, i32, i32
  }
  func.func @transform_1(%arg0: i32) -> (i32, i32, i32) {
    %c0_i32 = arith.constant 0 : i32
    %c0_i32_0 = arith.constant 0 : i32
    %c0_i32_1 = arith.constant 0 : i32
    %c0_i32_2 = arith.constant 0 : i32
    return %c0_i32, %c0_i32_0, %c0_i32_1 : i32, i32, i32
  }
  func.func @transform_2(%arg0: i32) -> (i32, i32, i32) {
    %c0_i32 = arith.constant 0 : i32
    %c0_i32_0 = arith.constant 0 : i32
    %c0_i32_1 = arith.constant 0 : i32
    %c0_i32_2 = arith.constant 0 : i32
    return %c0_i32, %c0_i32_0, %c0_i32_1 : i32, i32, i32
  }
  func.func @transform_3(%arg0: i32) -> (i32, i32, i32) {
    %c0_i32 = arith.constant 0 : i32
    %c0_i32_0 = arith.constant 0 : i32
    %c0_i32_1 = arith.constant 0 : i32
    %c0_i32_2 = arith.constant 0 : i32
    return %c0_i32, %c0_i32_0, %c0_i32_1 : i32, i32, i32
  }
  func.func @transform_4(%arg0: i32) -> (i32, i32, i32) {
    %c0_i32 = arith.constant 0 : i32
    %c0_i32_0 = arith.constant 0 : i32
    %c0_i32_1 = arith.constant 0 : i32
    %c0_i32_2 = arith.constant 0 : i32
    return %c0_i32, %c0_i32_0, %c0_i32_1 : i32, i32, i32
  }
  func.func @transform_5(%arg0: i32) -> (i32, i32) {
    %c0_i32 = arith.constant 0 : i32
    %c0_i32_0 = arith.constant 0 : i32
    return %arg0, %c0_i32 : i32, i32
  }
}

</mosaic_0001>

<llo_original>
// kernel: squeeze.10
$region0: #{squeeze.10}
  %s0 = inlined_call_operand.vmem [shape: f32[4,4,8,8], index: 0, kind: input, shape index: {}]
  %s1 = inlined_call_operand.vmem [shape: f32[1,16,64], index: 1, kind: output, shape index: {}]
  %v2 = vld [vmem:[%s0] ss:$8 sm:$0xf]
  %v3 = vld [vmem:[%s0] ss:$8 sm:$0xf0]
  %vm4 = vcmask 1047556
  %v5 = vsel %vm4, %v3, %v2
  %vm6 = vcmask 64512
  %7 = vst.msk [vmem:[%s1] sm:$0xff] %vm6, %v5
  %s8 = scalar_lea.vmem %s0, 64
  %v9 = vld [vmem:[%s8] ss:$8 sm:$0xf]
  %s10 = scalar_lea.vmem %s0, 64
  %v11 = vld [vmem:[%s10] ss:$8 sm:$0xf0]
  %vm12 = vcmask 1047556
  %v13 = vsel %vm12, %v11, %v9
  %vm14 = vcmask 64512
  %s15 = scalar_lea.vmem %s1, 8
  %16 = vst.msk [vmem:[%s15] sm:$0xff] %vm14, %v13
  %s17 = scalar_lea.vmem %s0, 7
  %v18 = vld [vmem:[%s17] ss:$8 sm:$0xf]
  %s19 = scalar_lea.vmem %s0, 7
  %v20 = vld [vmem:[%s19] ss:$8 sm:$0xf0]
  %vm21 = vcmask 1047556
  %v22 = vsel %vm21, %v20, %v18
  %23 = vrot.lane.b32.xlu0 %v22, 56
  %v24 = vpop.permute.xlu0 %23
  %vm25 = vcmask 523712
  %26 = vst.msk [vmem:[%s1] sm:$0xff] %vm25, %v24
  %s27 = scalar_lea.vmem %s0, 71
  %v28 = vld [vmem:[%s27] ss:$8 sm:$0xf]
  %s29 = scalar_lea.vmem %s0, 71
  %v30 = vld [vmem:[%s29] ss:$8 sm:$0xf0]
  %vm31 = vcmask 1047556
  %v32 = vsel %vm31, %v30, %v28
  %33 = vrot.lane.b32.xlu0 %v32, 56
  %v34 = vpop.permute.xlu0 %33
  %vm35 = vcmask 523712
  %s36 = scalar_lea.vmem %s1, 8
  %37 = vst.msk [vmem:[%s36] sm:$0xff] %vm35, %v34
  %s38 = scalar_lea.vmem %s0, 6
  %v39 = vld [vmem:[%s38] ss:$8 sm:$0xf]
  %s40 = scalar_lea.vmem %s0, 6
  %v41 = vld [vmem:[%s40] ss:$8 sm:$0xf0]
  %vm42 = vcmask 1047556
  %v43 = vsel %vm42, %v41, %v39
  %44 = vrot.lane.b32.xlu0 %v43, 48
  %v45 = vpop.permute.xlu0 %44
  %vm46 = vcmask 458112
  %47 = vst.msk [vmem:[%s1] sm:$0xff] %vm46, %v45
  %s48 = scalar_lea.vmem %s0, 70
  %v49 = vld [vmem:[%s48] ss:$8 sm:$0xf]
  %s50 = scalar_lea.vmem %s0, 70
  %v51 = vld [vmem:[%s50] ss:$8 sm:$0xf0]
  %vm52 = vcmask 1047556
  %v53 = vsel %vm52, %v51, %v49
  %54 = vrot.lane.b32.xlu0 %v53, 48
  %v55 = vpop.permute.xlu0 %54
  %vm56 = vcmask 458112
  %s57 = scalar_lea.vmem %s1, 8
  %58 = vst.msk [vmem:[%s57] sm:$0xff] %vm56, %v55
  %s59 = scalar_lea.vmem %s0, 5
  %v60 = vld [vmem:[%s59] ss:$8 sm:$0xf]
  %s61 = scalar_lea.vmem %s0, 5
  %v62 = vld [vmem:[%s61] ss:$8 sm:$0xf0]
  %vm63 = vcmask 1047556
  %v64 = vsel %vm63, %v62, %v60
  %65 = vrot.lane.b32.xlu0 %v64, 40
  %v66 = vpop.permute.xlu0 %65
  %vm67 = vcmask 392512
  %68 = vst.msk [vmem:[%s1] sm:$0xff] %vm67, %v66
  %s69 = scalar_lea.vmem %s0, 69
  %v70 = vld [vmem:[%s69] ss:$8 sm:$0xf]
  %s71 = scalar_lea.vmem %s0, 69
  %v72 = vld [vmem:[%s71] ss:$8 sm:$0xf0]
  %vm73 = vcmask 1047556
  %v74 = vsel %vm73, %v72, %v70
  %75 = vrot.lane.b32.xlu0 %v74, 40
  %v76 = vpop.permute.xlu0 %75
  %vm77 = vcmask 392512
  %s78 = scalar_lea.vmem %s1, 8
  %79 = vst.msk [vmem:[%s78] sm:$0xff] %vm77, %v76
  %s80 = scalar_lea.vmem %s0, 4
  %v81 = vld [vmem:[%s80] ss:$8 sm:$0xf]
  %s82 = scalar_lea.vmem %s0, 4
  %v83 = vld [vmem:[%s82] ss:$8 sm:$0xf0]
  %vm84 = vcmask 1047556
  %v85 = vsel %vm84, %v83, %v81
  %86 = vrot.lane.b32.xlu0 %v85, 32
  %v87 = vpop.permute.xlu0 %86
  %vm88 = vcmask 326912
  %89 = vst.msk [vmem:[%s1] sm:$0xff] %vm88, %v87
  %s90 = scalar_lea.vmem %s0, 68
  %v91 = vld [vmem:[%s90] ss:$8 sm:$0xf]
  %s92 = scalar_lea.vmem %s0, 68
  %v93 = vld [vmem:[%s92] ss:$8 sm:$0xf0]
  %vm94 = vcmask 1047556
  %v95 = vsel %vm94, %v93, %v91
  %96 = vrot.lane.b32.xlu0 %v95, 32
  %v97 = vpop.permute.xlu0 %96
  %vm98 = vcmask 326912
  %s99 = scalar_lea.vmem %s1, 8
  %100 = vst.msk [vmem:[%s99] sm:$0xff] %vm98, %v97
  %s101 = scalar_lea.vmem %s0, 3
  %v102 = vld [vmem:[%s101] ss:$8 sm:$0xf]
  %s103 = scalar_lea.vmem %s0, 3
  %v104 = vld [vmem:[%s103] ss:$8 sm:$0xf0]
  %vm105 = vcmask 1047556
  %v106 = vsel %vm105, %v104, %v102
  %107 = vrot.lane.b32.xlu0 %v106, 24
  %v108 = vpop.permute.xlu0 %107
  %vm109 = vcmask 261312
  %110 = vst.msk [vmem:[%s1] sm:$0xff] %vm109, %v108
  %s111 = scalar_lea.vmem %s0, 67
  %v112 = vld [vmem:[%s111] ss:$8 sm:$0xf]
  %s113 = scalar_lea.vmem %s0, 67
  %v114 = vld [vmem:[%s113] ss:$8 sm:$0xf0]
  %vm115 = vcmask 1047556
  %v116 = vsel %vm115, %v114, %v112
  %117 = vrot.lane.b32.xlu0 %v116, 24
  %v118 = vpop.permute.xlu0 %117
  %vm119 = vcmask 261312
  %s120 = scalar_lea.vmem %s1, 8
  %121 = vst.msk [vmem:[%s120] sm:$0xff] %vm119, %v118
  %s122 = scalar_lea.vmem %s0, 2
  %v123 = vld [vmem:[%s122] ss:$8 sm:$0xf]
  %s124 = scalar_lea.vmem %s0, 2
  %v125 = vld [vmem:[%s124] ss:$8 sm:$0xf0]
  %vm126 = vcmask 1047556
  %v127 = vsel %vm126, %v125, %v123
  %128 = vrot.lane.b32.xlu0 %v127, 16
  %v129 = vpop.permute.xlu0 %128
  %vm130 = vcmask 195712
  %131 = vst.msk [vmem:[%s1] sm:$0xff] %vm130, %v129
  %s132 = scalar_lea.vmem %s0, 66
  %v133 = vld [vmem:[%s132] ss:$8 sm:$0xf]
  %s134 = scalar_lea.vmem %s0, 66
  %v135 = vld [vmem:[%s134] ss:$8 sm:$0xf0]
  %vm136 = vcmask 1047556
  %v137 = vsel %vm136, %v135, %v133
  %138 = vrot.lane.b32.xlu0 %v137, 16
  %v139 = vpop.permute.xlu0 %138
  %vm140 = vcmask 195712
  %s141 = scalar_lea.vmem %s1, 8
  %142 = vst.msk [vmem:[%s141] sm:$0xff] %vm140, %v139
  %s143 = scalar_lea.vmem %s0, 1
  %v144 = vld [vmem:[%s143] ss:$8 sm:$0xf]
  %s145 = scalar_lea.vmem %s0, 1
  %v146 = vld [vmem:[%s145] ss:$8 sm:$0xf0]
  %vm147 = vcmask 1047556
  %v148 = vsel %vm147, %v146, %v144
  %149 = vrot.lane.b32.xlu0 %v148, 8
  %v150 = vpop.permute.xlu0 %149
  %vm151 = vcmask 130112
  %152 = vst.msk [vmem:[%s1] sm:$0xff] %vm151, %v150
  %s153 = scalar_lea.vmem %s0, 65
  %v154 = vld [vmem:[%s153] ss:$8 sm:$0xf]
  %s155 = scalar_lea.vmem %s0, 65
  %v156 = vld [vmem:[%s155] ss:$8 sm:$0xf0]
  %vm157 = vcmask 1047556
  %v158 = vsel %vm157, %v156, %v154
  %159 = vrot.lane.b32.xlu0 %v158, 8
  %v160 = vpop.permute.xlu0 %159
  %vm161 = vcmask 130112
  %s162 = scalar_lea.vmem %s1, 8
  %163 = vst.msk [vmem:[%s162] sm:$0xff] %vm161, %v160

// kernel: custom-call
$region0: #{custom-call}
  %s0 = inlined_call_operand.vmem [shape: f32[8,8,16,16], index: 0, kind: input, shape index: {}]
  %s1 = inlined_call_operand.vmem [shape: f32[8,8,16,16], index: 1, kind: input, shape index: {}]
  %s2 = inlined_call_operand.hbm [shape: c64[8,8,16,16], index: 2, kind: output, shape index: {}]
  %s3 = scalar_lea.hbm %s2, 1024
  $region1: #{custom-call} parent=0
    #allocation0 [shape = 's32[1]{0}', space=sflag, size = 0x4, scoped, tag = 'scoped memory for custom-call']
    %4 = vsyncpa [#allocation0], 0
    %s6 = sshll.u32 %s0, 4
    %s7 = int_to_ptr.vmem [resolvable:$true] %s6
    %s8 = sshll.u32 %s2, 4
    %s9 = int_to_ptr.hbm [resolvable:$true] %s8
    %11 = dma.vmem_to_hbm [thread:$0]  %s7, 16384, %s9, [#allocation0]
    %13 = dma.done [#allocation0], 16384
    %14 = vsyncpa [#allocation0], 1
  $region2: #{custom-call} parent=0
    #allocation1 [shape = 's32[1]{0}', space=sflag, size = 0x4, scoped, tag = 'scoped memory for custom-call']
    %15 = vsyncpa [#allocation1], 0
    %s17 = sshll.u32 %s1, 4
    %s18 = int_to_ptr.vmem [resolvable:$true] %s17
    %s19 = sshll.u32 %s3, 4
    %s20 = int_to_ptr.hbm [resolvable:$true] %s19
    %22 = dma.vmem_to_hbm [thread:$0]  %s18, 16384, %s20, [#allocation1]
    %24 = dma.done [#allocation1], 16384
    %25 = vsyncpa [#allocation1], 1

// kernel: decomposable_parameters_forward.1
$region0: #{decomposable_parameters_forward.1}
  #allocation0 [shape = 'u32[]', space=smem, size = 0x4, offset = 0x4, fixed_abs, tag = 'smem constant byte address 0x4 - core index']
  #allocation1 [shape = 'u32[72,128]{1,0:T(1,128)}', space=vmem, size = 0x9000, scoped, tag = 'internal scratch']
  #allocation2 [shape = 'f32[32,512]{1,0:T(8,128)}', space=vmem, size = 0x10000, scoped, tag = 'scratch operand']
  %s0 = inlined_call_operand.vmem [shape: f32[2,8,4], index: 0, kind: input, shape index: {}]
  %s1 = inlined_call_operand.vmem [shape: f32[2,8,4], index: 1, kind: input, shape index: {}]
  %s2 = inlined_call_operand.vmem [shape: f32[2,16,64], index: 2, kind: input, shape index: {}]
  %s3 = inlined_call_operand.vmem [shape: f32[2,8,16], index: 3, kind: input, shape index: {}]
  %s4 = inlined_call_operand.vmem [shape: f32[2,8,16], index: 4, kind: input, shape index: {}]
  %s5 = inlined_call_operand.vmem [shape: f32[64,512], index: 5, kind: output, shape index: {}]
  %s6 = sld [smem:[#allocation0]]
  $region34: #{decomposable_parameters_forward.1} parent=0
    _
  %s8 = ssub.s32 1, %s6
  %s9 = scalar_select 0, %s8, %s6
  // Predicated region
  $region2: #{decomposable_parameters_forward.1} parent=0 // pred_check
    _
  $region3: #{decomposable_parameters_forward.1} parent=0 // pred_check_branch
    %11 = sbr.rel (0) target = $region5
  $region4: #{decomposable_parameters_forward.1} parent=0 // pred_region
    _
  $region5: #{decomposable_parameters_forward.1} parent=0 // pred_fallthru
    _
  // Predicated region
  $region6: #{decomposable_parameters_forward.1} parent=0 // pred_check
    _
  $region7: #{decomposable_parameters_forward.1} parent=0 // pred_check_branch
    %13 = sbr.rel (0) target = $region9
  $region8: #{decomposable_parameters_forward.1} parent=0 // pred_region
    _
  $region9: #{decomposable_parameters_forward.1} parent=0 // pred_fallthru
    _
  // Predicated region
  $region10: #{decomposable_parameters_forward.1} parent=0 // pred_check
    _
  $region11: #{decomposable_parameters_forward.1} parent=0 // pred_check_branch
    %15 = sbr.rel (0) target = $region13
  $region12: #{decomposable_parameters_forward.1} parent=0 // pred_region
    _
  $region13: #{decomposable_parameters_forward.1} parent=0 // pred_fallthru
    _
  // Predicated region
  $region14: #{decomposable_parameters_forward.1} parent=0 // pred_check
    _
  $region15: #{decomposable_parameters_forward.1} parent=0 // pred_check_branch
    %17 = sbr.rel (0) target = $region17
  $region16: #{decomposable_parameters_forward.1} parent=0 // pred_region
    _
  $region17: #{decomposable_parameters_forward.1} parent=0 // pred_fallthru
    _
  // Predicated region
  $region18: #{decomposable_parameters_forward.1} parent=0 // pred_check
    _
  $region19: #{decomposable_parameters_forward.1} parent=0 // pred_check_branch
    %19 = sbr.rel (0) target = $region21
  $region20: #{decomposable_parameters_forward.1} parent=0 // pred_region
    _
  $region21: #{decomposable_parameters_forward.1} parent=0 // pred_fallthru
    _
  %p20 = scmp.eq.s32.totalorder 0, 0
  // Predicated region
  $region22: #{decomposable_parameters_forward.1} parent=0 // pred_check
    %p21 = pneg %p20
  $region23: #{decomposable_parameters_forward.1} parent=0 // pred_check_branch
    %23 = sbr.rel (%p21) target = $region25
  $region24: #{decomposable_parameters_forward.1} parent=0 // pred_region
    %v24 = vld [vmem:[%s3] sm:$0xff]
    %s25 = scalar_lea.vmem %s3, 8
    %v26 = vld [vmem:[%s25] sm:$0xff]
    %v27 = vld [vmem:[%s4] sm:$0xff]
    %s28 = scalar_lea.vmem %s4, 8
    %v29 = vld [vmem:[%s28] sm:$0xff]
    %v30 = vlaneseq
    %v31 = vshrl.u32 %v30, 7
    %v32 = vadd.s32 %v31, 8
    %v33 = vadd.s32 %v31, 16
    %v34 = vadd.s32 %v31, 24
    %v35 = vadd.s32 %v31, 32
    %v36 = vadd.s32 %v31, 40
    %v37 = vadd.s32 %v31, 48
    %v38 = vadd.s32 %v31, 56
    %v39 = vlaneseq
    %v40 = vand.u32 %v39, 127
    %v41 = vmul.u32 %v40, 8
    %vm42 = vcmp.ge.s32.totalorder %v31, %v41
    %vm43 = vcmp.ge.s32.totalorder %v32, %v41
    %vm44 = vcmp.ge.s32.totalorder %v33, %v41
    %vm45 = vcmp.ge.s32.totalorder %v34, %v41
    %vm46 = vcmp.ge.s32.totalorder %v35, %v41
    %vm47 = vcmp.ge.s32.totalorder %v36, %v41
    %vm48 = vcmp.ge.s32.totalorder %v37, %v41
    %vm49 = vcmp.ge.s32.totalorder %v38, %v41
    %v50 = vadd.s32 %v41, 8
    %vm51 = vcmp.lt.s32.totalorder %v31, %v50
    %vm52 = vcmp.lt.s32.totalorder %v32, %v50
    %vm53 = vcmp.lt.s32.totalorder %v33, %v50
    %vm54 = vcmp.lt.s32.totalorder %v34, %v50
    %vm55 = vcmp.lt.s32.totalorder %v35, %v50
    %vm56 = vcmp.lt.s32.totalorder %v36, %v50
    %vm57 = vcmp.lt.s32.totalorder %v37, %v50
    %vm58 = vcmp.lt.s32.totalorder %v38, %v50
    %vm59 = vmand %vm42, %vm51
    %vm60 = vmand %vm43, %vm52
    %vm61 = vmand %vm44, %vm53
    %vm62 = vmand %vm45, %vm54
    %vm63 = vmand %vm46, %vm55
    %vm64 = vmand %vm47, %vm56
    %vm65 = vmand %vm48, %vm57
    %vm66 = vmand %vm49, %vm58
    %v67 = vsel %vm59, 1.0, 0.0
    %v68 = vsel %vm60, 1.0, 0.0
    %v69 = vsel %vm61, 1.0, 0.0
    %v70 = vsel %vm62, 1.0, 0.0
    %v71 = vsel %vm63, 1.0, 0.0
    %v72 = vsel %vm64, 1.0, 0.0
    %v73 = vsel %vm65, 1.0, 0.0
    %v74 = vsel %vm66, 1.0, 0.0
    %v75 = vadd.s32 %v40, 128
    %v76 = vmul.u32 %v31, 16
    %v77 = vmul.u32 %v32, 16
    %vm78 = vcmp.ge.s32.totalorder %v40, %v76
    %vm79 = vcmp.ge.s32.totalorder %v75, %v76
    %vm80 = vcmp.ge.s32.totalorder %v40, %v77
    %vm81 = vcmp.ge.s32.totalorder %v75, %v77
    %v82 = vadd.s32 %v76, 16
    %v83 = vadd.s32 %v77, 16
    %vm84 = vcmp.lt.s32.totalorder %v40, %v82
    %vm85 = vcmp.lt.s32.totalorder %v75, %v82
    %vm86 = vcmp.lt.s32.totalorder %v40, %v83
    %vm87 = vcmp.lt.s32.totalorder %v75, %v83
    %vm88 = vmand %vm78, %vm84
    %vm89 = vmand %vm79, %vm85
    %vm90 = vmand %vm80, %vm86
    %vm91 = vmand %vm81, %vm87
    %v92 = vsel %vm88, 1.0, 0.0
    %v93 = vsel %vm89, 1.0, 0.0
    %v94 = vsel %vm90, 1.0, 0.0
    %v95 = vsel %vm91, 1.0, 0.0
    %vm96 = vcmask 64512
    %v98 = vsel %vm96, %v67, 0
    %v101 = vsel %vm96, %v68, 0
    %v104 = vsel %vm96, %v69, 0
    %v107 = vsel %vm96, %v70, 0
    %v110 = vsel %vm96, %v71, 0
    %v113 = vsel %vm96, %v72, 0
    %v116 = vsel %vm96, %v73, 0
    %v119 = vsel %vm96, %v74, 0
    %121 = vmatpush.msra.mxu0 0.0
    %122 = vmatpush.msra.mxu0 0.0
    %123 = vmatpush.msra.mxu0 0.0
    %124 = vmatpush.msra.mxu0 0.0
    %125 = vmatpush.msra.mxu0 0.0
    %126 = vmatpush.msra.mxu0 0.0
    %127 = vmatpush.msra.mxu0 0.0
    %128 = vmatpush.msra.mxu0 0.0
    %129 = vmatpush.msra.mxu0 0.0
    %130 = vmatpush.msra.mxu0 0.0
    %131 = vmatpush.msra.mxu0 0.0
    %132 = vmatpush.msra.mxu0 0.0
    %133 = vmatpush.msra.mxu0 0.0
    %134 = vmatpush.msra.mxu0 0.0
    %135 = vmatpush.msra.mxu0 0.0
    %136 = vmatpush.msra.mxu0 %v24
    %137 = vmatmul.f32.gmra.mxu0 %v98
    %v138 = vpop.f32.mrf.mxu0
    %v139 = vadd.f32 0.0, %v138
    %140 = vmatmul.f32.gmra.mxu0 %v101
    %v141 = vpop.f32.mrf.mxu0
    %v142 = vadd.f32 0.0, %v141
    %143 = vmatmul.f32.gmra.mxu0 %v104
    %v144 = vpop.f32.mrf.mxu0
    %v145 = vadd.f32 0.0, %v144
    %146 = vmatmul.f32.gmra.mxu0 %v107
    %v147 = vpop.f32.mrf.mxu0
    %v148 = vadd.f32 0.0, %v147
    %149 = vmatmul.f32.gmra.mxu0 %v110
    %v150 = vpop.f32.mrf.mxu0
    %v151 = vadd.f32 0.0, %v150
    %152 = vmatmul.f32.gmra.mxu0 %v113
    %v153 = vpop.f32.mrf.mxu0
    %v154 = vadd.f32 0.0, %v153
    %155 = vmatmul.f32.gmra.mxu0 %v116
    %v156 = vpop.f32.mrf.mxu0
    %v157 = vadd.f32 0.0, %v156
    %158 = vmatmul.f32.gmra.mxu0 %v119
    %v159 = vpop.f32.mrf.mxu0
    %v160 = vadd.f32 0.0, %v159
    %161 = vdwg.mxu0
    %vm162 = vcmask 130048
    %v164 = vsel %vm162, %v139, 0
    %v167 = vsel %vm162, %v142, 0
    %v170 = vsel %vm162, %v145, 0
    %v173 = vsel %vm162, %v148, 0
    %v176 = vsel %vm162, %v151, 0
    %v179 = vsel %vm162, %v154, 0
    %v182 = vsel %vm162, %v157, 0
    %v185 = vsel %vm162, %v160, 0
    %187 = vmatpush.msra.mxu0 0.0
    %188 = vmatpush.msra.mxu0 0.0
    %189 = vmatpush.msra.mxu0 0.0
    %190 = vmatpush.msra.mxu0 0.0
    %191 = vmatpush.msra.mxu0 0.0
    %192 = vmatpush.msra.mxu0 0.0
    %193 = vmatpush.msra.mxu0 0.0
    %194 = vmatpush.msra.mxu0 0.0
    %195 = vmatpush.msra.mxu0 0.0
    %196 = vmatpush.msra.mxu0 0.0
    %197 = vmatpush.msra.mxu0 0.0
    %198 = vmatpush.msra.mxu0 0.0
    %199 = vmatpush.msra.mxu0 0.0
    %200 = vmatpush.msra.mxu0 0.0
    %201 = vmatpush.msra.mxu0 %v94
    %202 = vmatpush.msra.mxu0 %v92
    %203 = vmatmul.f32.gmra.mxu0 %v164
    %v204 = vpop.f32.mrf.mxu0
    %v205 = vadd.f32 0.0, %v204
    %206 = vmatmul.f32.gmra.mxu0 %v167
    %v207 = vpop.f32.mrf.mxu0
    %v208 = vadd.f32 0.0, %v207
    %209 = vmatmul.f32.gmra.mxu0 %v170
    %v210 = vpop.f32.mrf.mxu0
    %v211 = vadd.f32 0.0, %v210
    %212 = vmatmul.f32.gmra.mxu0 %v173
    %v213 = vpop.f32.mrf.mxu0
    %v214 = vadd.f32 0.0, %v213
    %215 = vmatmul.f32.gmra.mxu0 %v176
    %v216 = vpop.f32.mrf.mxu0
    %v217 = vadd.f32 0.0, %v216
    %218 = vmatmul.f32.gmra.mxu0 %v179
    %v219 = vpop.f32.mrf.mxu0
    %v220 = vadd.f32 0.0, %v219
    %221 = vmatmul.f32.gmra.mxu0 %v182
    %v222 = vpop.f32.mrf.mxu0
    %v223 = vadd.f32 0.0, %v222
    %224 = vmatmul.f32.gmra.mxu0 %v185
    %v225 = vpop.f32.mrf.mxu0
    %v226 = vadd.f32 0.0, %v225
    %227 = vdwg.mxu0
    %228 = vmatpush.msra.mxu0 0.0
    %229 = vmatpush.msra.mxu0 0.0
    %230 = vmatpush.msra.mxu0 0.0
    %231 = vmatpush.msra.mxu0 0.0
    %232 = vmatpush.msra.mxu0 0.0
    %233 = vmatpush.msra.mxu0 0.0
    %234 = vmatpush.msra.mxu0 0.0
    %235 = vmatpush.msra.mxu0 0.0
    %236 = vmatpush.msra.mxu0 0.0
    %237 = vmatpush.msra.mxu0 0.0
    %238 = vmatpush.msra.mxu0 0.0
    %239 = vmatpush.msra.mxu0 0.0
    %240 = vmatpush.msra.mxu0 0.0
    %241 = vmatpush.msra.mxu0 0.0
    %242 = vmatpush.msra.mxu0 %v95
    %243 = vmatpush.msra.mxu0 %v93
    %244 = vmatmul.f32.gmra.mxu0 %v164
    %v245 = vpop.f32.mrf.mxu0
    %v246 = vadd.f32 0.0, %v245
    %247 = vmatmul.f32.gmra.mxu0 %v167
    %v248 = vpop.f32.mrf.mxu0
    %v249 = vadd.f32 0.0, %v248
    %250 = vmatmul.f32.gmra.mxu0 %v170
    %v251 = vpop.f32.mrf.mxu0
    %v252 = vadd.f32 0.0, %v251
    %253 = vmatmul.f32.gmra.mxu0 %v173
    %v254 = vpop.f32.mrf.mxu0
    %v255 = vadd.f32 0.0, %v254
    %256 = vmatmul.f32.gmra.mxu0 %v176
    %v257 = vpop.f32.mrf.mxu0
    %v258 = vadd.f32 0.0, %v257
    %259 = vmatmul.f32.gmra.mxu0 %v179
    %v260 = vpop.f32.mrf.mxu0
    %v261 = vadd.f32 0.0, %v260
    %262 = vmatmul.f32.gmra.mxu0 %v182
    %v263 = vpop.f32.mrf.mxu0
    %v264 = vadd.f32 0.0, %v263
    %265 = vmatmul.f32.gmra.mxu0 %v185
    %v266 = vpop.f32.mrf.mxu0
    %v267 = vadd.f32 0.0, %v266
    %268 = vdwg.mxu0
    %269 = vmatpush.msra.mxu0 0.0
    %270 = vmatpush.msra.mxu0 0.0
    %271 = vmatpush.msra.mxu0 0.0
    %272 = vmatpush.msra.mxu0 0.0
    %273 = vmatpush.msra.mxu0 0.0
    %274 = vmatpush.msra.mxu0 0.0
    %275 = vmatpush.msra.mxu0 0.0
    %276 = vmatpush.msra.mxu0 0.0
    %277 = vmatpush.msra.mxu0 0.0
    %278 = vmatpush.msra.mxu0 0.0
    %279 = vmatpush.msra.mxu0 0.0
    %280 = vmatpush.msra.mxu0 0.0
    %281 = vmatpush.msra.mxu0 0.0
    %282 = vmatpush.msra.mxu0 0.0
    %283 = vmatpush.msra.mxu0 0.0
    %284 = vmatpush.msra.mxu0 %v26
    %285 = vmatmul.f32.gmra.mxu0 %v98
    %v286 = vpop.f32.mrf.mxu0
    %v287 = vadd.f32 0.0, %v286
    %288 = vmatmul.f32.gmra.mxu0 %v101
    %v289 = vpop.f32.mrf.mxu0
    %v290 = vadd.f32 0.0, %v289
    %291 = vmatmul.f32.gmra.mxu0 %v104
    %v292 = vpop.f32.mrf.mxu0
    %v293 = vadd.f32 0.0, %v292
    %294 = vmatmul.f32.gmra.mxu0 %v107
    %v295 = vpop.f32.mrf.mxu0
    %v296 = vadd.f32 0.0, %v295
    %297 = vmatmul.f32.gmra.mxu0 %v110
    %v298 = vpop.f32.mrf.mxu0
    %v299 = vadd.f32 0.0, %v298
    %300 = vmatmul.f32.gmra.mxu0 %v113
    %v301 = vpop.f32.mrf.mxu0
    %v302 = vadd.f32 0.0, %v301
    %303 = vmatmul.f32.gmra.mxu0 %v116
    %v304 = vpop.f32.mrf.mxu0
    %v305 = vadd.f32 0.0, %v304
    %306 = vmatmul.f32.gmra.mxu0 %v119
    %v307 = vpop.f32.mrf.mxu0
    %v308 = vadd.f32 0.0, %v307
    %309 = vdwg.mxu0
    %v311 = vsel %vm162, %v287, 0
    %v314 = vsel %vm162, %v290, 0
    %v317 = vsel %vm162, %v293, 0
    %v320 = vsel %vm162, %v296, 0
    %v323 = vsel %vm162, %v299, 0
    %v326 = vsel %vm162, %v302, 0
    %v329 = vsel %vm162, %v305, 0
    %v332 = vsel %vm162, %v308, 0
    %334 = vmatpush.msra.mxu0 0.0
    %335 = vmatpush.msra.mxu0 0.0
    %336 = vmatpush.msra.mxu0 0.0
    %337 = vmatpush.msra.mxu0 0.0
    %338 = vmatpush.msra.mxu0 0.0
    %339 = vmatpush.msra.mxu0 0.0
    %340 = vmatpush.msra.mxu0 0.0
    %341 = vmatpush.msra.mxu0 0.0
    %342 = vmatpush.msra.mxu0 0.0
    %343 = vmatpush.msra.mxu0 0.0
    %344 = vmatpush.msra.mxu0 0.0
    %345 = vmatpush.msra.mxu0 0.0
    %346 = vmatpush.msra.mxu0 0.0
    %347 = vmatpush.msra.mxu0 0.0
    %348 = vmatpush.msra.mxu0 %v94
    %349 = vmatpush.msra.mxu0 %v92
    %350 = vmatmul.f32.gmra.mxu0 %v311
    %v351 = vpop.f32.mrf.mxu0
    %v352 = vadd.f32 0.0, %v351
    %353 = vmatmul.f32.gmra.mxu0 %v314
    %v354 = vpop.f32.mrf.mxu0
    %v355 = vadd.f32 0.0, %v354
    %356 = vmatmul.f32.gmra.mxu0 %v317
    %v357 = vpop.f32.mrf.mxu0
    %v358 = vadd.f32 0.0, %v357
    %359 = vmatmul.f32.gmra.mxu0 %v320
    %v360 = vpop.f32.mrf.mxu0
    %v361 = vadd.f32 0.0, %v360
    %362 = vmatmul.f32.gmra.mxu0 %v323
    %v363 = vpop.f32.mrf.mxu0
    %v364 = vadd.f32 0.0, %v363
    %365 = vmatmul.f32.gmra.mxu0 %v326
    %v366 = vpop.f32.mrf.mxu0
    %v367 = vadd.f32 0.0, %v366
    %368 = vmatmul.f32.gmra.mxu0 %v329
    %v369 = vpop.f32.mrf.mxu0
    %v370 = vadd.f32 0.0, %v369
    %371 = vmatmul.f32.gmra.mxu0 %v332
    %v372 = vpop.f32.mrf.mxu0
    %v373 = vadd.f32 0.0, %v372
    %374 = vdwg.mxu0
    %375 = vmatpush.msra.mxu0 0.0
    %376 = vmatpush.msra.mxu0 0.0
    %377 = vmatpush.msra.mxu0 0.0
    %378 = vmatpush.msra.mxu0 0.0
    %379 = vmatpush.msra.mxu0 0.0
    %380 = vmatpush.msra.mxu0 0.0
    %381 = vmatpush.msra.mxu0 0.0
    %382 = vmatpush.msra.mxu0 0.0
    %383 = vmatpush.msra.mxu0 0.0
    %384 = vmatpush.msra.mxu0 0.0
    %385 = vmatpush.msra.mxu0 0.0
    %386 = vmatpush.msra.mxu0 0.0
    %387 = vmatpush.msra.mxu0 0.0
    %388 = vmatpush.msra.mxu0 0.0
    %389 = vmatpush.msra.mxu0 %v95
    %390 = vmatpush.msra.mxu0 %v93
    %391 = vmatmul.f32.gmra.mxu0 %v311
    %v392 = vpop.f32.mrf.mxu0
    %v393 = vadd.f32 0.0, %v392
    %394 = vmatmul.f32.gmra.mxu0 %v314
    %v395 = vpop.f32.mrf.mxu0
    %v396 = vadd.f32 0.0, %v395
    %397 = vmatmul.f32.gmra.mxu0 %v317
    %v398 = vpop.f32.mrf.mxu0
    %v399 = vadd.f32 0.0, %v398
    %400 = vmatmul.f32.gmra.mxu0 %v320
    %v401 = vpop.f32.mrf.mxu0
    %v402 = vadd.f32 0.0, %v401
    %403 = vmatmul.f32.gmra.mxu0 %v323
    %v404 = vpop.f32.mrf.mxu0
    %v405 = vadd.f32 0.0, %v404
    %406 = vmatmul.f32.gmra.mxu0 %v326
    %v407 = vpop.f32.mrf.mxu0
    %v408 = vadd.f32 0.0, %v407
    %409 = vmatmul.f32.gmra.mxu0 %v329
    %v410 = vpop.f32.mrf.mxu0
    %v411 = vadd.f32 0.0, %v410
    %412 = vmatmul.f32.gmra.mxu0 %v332
    %v413 = vpop.f32.mrf.mxu0
    %v414 = vadd.f32 0.0, %v413
    %415 = vdwg.mxu0
    %417 = vrot.lane.b32.xlu0 %v27, 16
    %v418 = vpop.permute.xlu0 %417
    %420 = vrot.lane.b32.xlu0 %v27, 32
    %v421 = vpop.permute.xlu0 %420
    %423 = vrot.lane.b32.xlu0 %v27, 48
    %v424 = vpop.permute.xlu0 %423
    %426 = vrot.lane.b32.xlu0 %v27, 64
    %v427 = vpop.permute.xlu0 %426
    %429 = vrot.lane.b32.xlu0 %v27, 80
    %v430 = vpop.permute.xlu0 %429
    %432 = vrot.lane.b32.xlu0 %v27, 96
    %v433 = vpop.permute.xlu0 %432
    %435 = vrot.lane.b32.xlu0 %v27, 112
    %v436 = vpop.permute.xlu0 %435
    %v438 = vsel %vm162, %v27, %v418
    %vm439 = vcmask 261120
    %v440 = vsel %vm439, %v438, %v421
    %vm441 = vcmask 392192
    %v442 = vsel %vm441, %v440, %v424
    %vm443 = vcmask 523264
    %v444 = vsel %vm443, %v442, %v427
    %vm445 = vcmask 654336
    %v446 = vsel %vm445, %v444, %v430
    %vm447 = vcmask 785408
    %v448 = vsel %vm447, %v446, %v433
    %vm449 = vcmask 916480
    %v450 = vsel %vm449, %v448, %v436
    %452 = vrot.lane.b32.xlu0 %v29, 16
    %v453 = vpop.permute.xlu0 %452
    %455 = vrot.lane.b32.xlu0 %v29, 32
    %v456 = vpop.permute.xlu0 %455
    %458 = vrot.lane.b32.xlu0 %v29, 48
    %v459 = vpop.permute.xlu0 %458
    %461 = vrot.lane.b32.xlu0 %v29, 64
    %v462 = vpop.permute.xlu0 %461
    %464 = vrot.lane.b32.xlu0 %v29, 80
    %v465 = vpop.permute.xlu0 %464
    %467 = vrot.lane.b32.xlu0 %v29, 96
    %v468 = vpop.permute.xlu0 %467
    %470 = vrot.lane.b32.xlu0 %v29, 112
    %v471 = vpop.permute.xlu0 %470
    %v473 = vsel %vm162, %v29, %v453
    %v474 = vsel %vm439, %v473, %v456
    %v475 = vsel %vm441, %v474, %v459
    %v476 = vsel %vm443, %v475, %v462
    %v477 = vsel %vm445, %v476, %v465
    %v478 = vsel %vm447, %v477, %v468
    %v479 = vsel %vm449, %v478, %v471
    %v480 = vmul.f32 %v205, %v450
    %v481 = vmul.f32 %v246, %v450
    %v482 = vmul.f32 %v208, %v450
    %v483 = vmul.f32 %v249, %v450
    %v484 = vmul.f32 %v211, %v450
    %v485 = vmul.f32 %v252, %v450
    %v486 = vmul.f32 %v214, %v450
    %v487 = vmul.f32 %v255, %v450
    %v488 = vmul.f32 %v217, %v450
    %v489 = vmul.f32 %v258, %v450
    %v490 = vmul.f32 %v220, %v450
    %v491 = vmul.f32 %v261, %v450
    %v492 = vmul.f32 %v223, %v450
    %v493 = vmul.f32 %v264, %v450
    %v494 = vmul.f32 %v226, %v450
    %v495 = vmul.f32 %v267, %v450
    %v496 = vmul.f32 %v352, %v479
    %v497 = vmul.f32 %v393, %v479
    %v498 = vmul.f32 %v355, %v479
    %v499 = vmul.f32 %v396, %v479
    %v500 = vmul.f32 %v358, %v479
    %v501 = vmul.f32 %v399, %v479
    %v502 = vmul.f32 %v361, %v479
    %v503 = vmul.f32 %v402, %v479
    %v504 = vmul.f32 %v364, %v479
    %v505 = vmul.f32 %v405, %v479
    %v506 = vmul.f32 %v367, %v479
    %v507 = vmul.f32 %v408, %v479
    %v508 = vmul.f32 %v370, %v479
    %v509 = vmul.f32 %v411, %v479
    %v510 = vmul.f32 %v373, %v479
    %v511 = vmul.f32 %v414, %v479
    %v512 = vsub.f32 %v480, %v496
    %v513 = vsub.f32 %v481, %v497
    %v514 = vsub.f32 %v482, %v498
    %v515 = vsub.f32 %v483, %v499
    %v516 = vsub.f32 %v484, %v500
    %v517 = vsub.f32 %v485, %v501
    %v518 = vsub.f32 %v486, %v502
    %v519 = vsub.f32 %v487, %v503
    %v520 = vsub.f32 %v488, %v504
    %v521 = vsub.f32 %v489, %v505
    %v522 = vsub.f32 %v490, %v506
    %v523 = vsub.f32 %v491, %v507
    %v524 = vsub.f32 %v492, %v508
    %v525 = vsub.f32 %v493, %v509
    %v526 = vsub.f32 %v494, %v510
    %v527 = vsub.f32 %v495, %v511
    %v528 = vmul.f32 %v205, %v479
    %v529 = vmul.f32 %v246, %v479
    %v530 = vmul.f32 %v208, %v479
    %v531 = vmul.f32 %v249, %v479
    %v532 = vmul.f32 %v211, %v479
    %v533 = vmul.f32 %v252, %v479
    %v534 = vmul.f32 %v214, %v479
    %v535 = vmul.f32 %v255, %v479
    %v536 = vmul.f32 %v217, %v479
    %v537 = vmul.f32 %v258, %v479
    %v538 = vmul.f32 %v220, %v479
    %v539 = vmul.f32 %v261, %v479
    %v540 = vmul.f32 %v223, %v479
    %v541 = vmul.f32 %v264, %v479
    %v542 = vmul.f32 %v226, %v479
    %v543 = vmul.f32 %v267, %v479
    %v544 = vmul.f32 %v352, %v450
    %v545 = vmul.f32 %v393, %v450
    %v546 = vmul.f32 %v355, %v450
    %v547 = vmul.f32 %v396, %v450
    %v548 = vmul.f32 %v358, %v450
    %v549 = vmul.f32 %v399, %v450
    %v550 = vmul.f32 %v361, %v450
    %v551 = vmul.f32 %v402, %v450
    %v552 = vmul.f32 %v364, %v450
    %v553 = vmul.f32 %v405, %v450
    %v554 = vmul.f32 %v367, %v450
    %v555 = vmul.f32 %v408, %v450
    %v556 = vmul.f32 %v370, %v450
    %v557 = vmul.f32 %v411, %v450
    %v558 = vmul.f32 %v373, %v450
    %v559 = vmul.f32 %v414, %v450
    %v560 = vadd.f32 %v528, %v544
    %v561 = vadd.f32 %v529, %v545
    %v562 = vadd.f32 %v530, %v546
    %v563 = vadd.f32 %v531, %v547
    %v564 = vadd.f32 %v532, %v548
    %v565 = vadd.f32 %v533, %v549
    %v566 = vadd.f32 %v534, %v550
    %v567 = vadd.f32 %v535, %v551
    %v568 = vadd.f32 %v536, %v552
    %v569 = vadd.f32 %v537, %v553
    %v570 = vadd.f32 %v538, %v554
    %v571 = vadd.f32 %v539, %v555
    %v572 = vadd.f32 %v540, %v556
    %v573 = vadd.f32 %v541, %v557
    %v574 = vadd.f32 %v542, %v558
    %v575 = vadd.f32 %v543, %v559
    %v576 = vld [vmem:[%s2] sm:$0xff]
    %v577 = vld [vmem:[%s2 + $0x8] sm:$0xff]
    %s578 = scalar_lea.vmem %s2, 16
    %v579 = vld [vmem:[%s578] sm:$0xff]
    %v580 = vld [vmem:[%s578 + $0x8] sm:$0xff]
    %v582 = vsel %vm443, %v576, 0
    %v585 = vsel %vm443, %v577, 0
    %587 = vmatpush.msra.mxu0 0.0
    %588 = vmatpush.msra.mxu0 0.0
    %589 = vmatpush.msra.mxu0 0.0
    %590 = vmatpush.msra.mxu0 0.0
    %591 = vmatpush.msra.mxu0 0.0
    %592 = vmatpush.msra.mxu0 0.0
    %593 = vmatpush.msra.mxu0 0.0
    %594 = vmatpush.msra.mxu0 0.0
    %595 = vmatpush.msra.mxu0 %v526
    %596 = vmatpush.msra.mxu0 %v524
    %597 = vmatpush.msra.mxu0 %v522
    %598 = vmatpush.msra.mxu0 %v520
    %599 = vmatpush.msra.mxu0 %v518
    %600 = vmatpush.msra.mxu0 %v516
    %601 = vmatpush.msra.mxu0 %v514
    %602 = vmatpush.msra.mxu0 %v512
    %603 = vmatmul.f32.gmra.mxu0 %v582
    %v604 = vpop.f32.mrf.mxu0
    %v605 = vadd.f32 0.0, %v604
    %606 = vmatmul.f32.gmra.mxu0 %v585
    %v607 = vpop.f32.mrf.mxu0
    %v608 = vadd.f32 0.0, %v607
    %609 = vdwg.mxu0
    %610 = vmatpush.msra.mxu0 0.0
    %611 = vmatpush.msra.mxu0 0.0
    %612 = vmatpush.msra.mxu0 0.0
    %613 = vmatpush.msra.mxu0 0.0
    %614 = vmatpush.msra.mxu0 0.0
    %615 = vmatpush.msra.mxu0 0.0
    %616 = vmatpush.msra.mxu0 0.0
    %617 = vmatpush.msra.mxu0 0.0
    %618 = vmatpush.msra.mxu0 %v527
    %619 = vmatpush.msra.mxu0 %v525
    %620 = vmatpush.msra.mxu0 %v523
    %621 = vmatpush.msra.mxu0 %v521
    %622 = vmatpush.msra.mxu0 %v519
    %623 = vmatpush.msra.mxu0 %v517
    %624 = vmatpush.msra.mxu0 %v515
    %625 = vmatpush.msra.mxu0 %v513
    %626 = vmatmul.f32.gmra.mxu0 %v582
    %v627 = vpop.f32.mrf.mxu0
    %v628 = vadd.f32 0.0, %v627
    %629 = vmatmul.f32.gmra.mxu0 %v585
    %v630 = vpop.f32.mrf.mxu0
    %v631 = vadd.f32 0.0, %v630
    %632 = vdwg.mxu0
    %v634 = vsel %vm443, %v579, 0
    %v637 = vsel %vm443, %v580, 0
    %639 = vmatpush.msra.mxu0 0.0
    %640 = vmatpush.msra.mxu0 0.0
    %641 = vmatpush.msra.mxu0 0.0
    %642 = vmatpush.msra.mxu0 0.0
    %643 = vmatpush.msra.mxu0 0.0
    %644 = vmatpush.msra.mxu0 0.0
    %645 = vmatpush.msra.mxu0 0.0
    %646 = vmatpush.msra.mxu0 0.0
    %647 = vmatpush.msra.mxu0 %v574
    %648 = vmatpush.msra.mxu0 %v572
    %649 = vmatpush.msra.mxu0 %v570
    %650 = vmatpush.msra.mxu0 %v568
    %651 = vmatpush.msra.mxu0 %v566
    %652 = vmatpush.msra.mxu0 %v564
    %653 = vmatpush.msra.mxu0 %v562
    %654 = vmatpush.msra.mxu0 %v560
    %655 = vmatmul.f32.gmra.mxu0 %v634
    %v656 = vpop.f32.mrf.mxu0
    %v657 = vadd.f32 0.0, %v656
    %658 = vmatmul.f32.gmra.mxu0 %v637
    %v659 = vpop.f32.mrf.mxu0
    %v660 = vadd.f32 0.0, %v659
    %661 = vdwg.mxu0
    %662 = vmatpush.msra.mxu0 0.0
    %663 = vmatpush.msra.mxu0 0.0
    %664 = vmatpush.msra.mxu0 0.0
    %665 = vmatpush.msra.mxu0 0.0
    %666 = vmatpush.msra.mxu0 0.0
    %667 = vmatpush.msra.mxu0 0.0
    %668 = vmatpush.msra.mxu0 0.0
    %669 = vmatpush.msra.mxu0 0.0
    %670 = vmatpush.msra.mxu0 %v575
    %671 = vmatpush.msra.mxu0 %v573
    %672 = vmatpush.msra.mxu0 %v571
    %673 = vmatpush.msra.mxu0 %v569
    %674 = vmatpush.msra.mxu0 %v567
    %675 = vmatpush.msra.mxu0 %v565
    %676 = vmatpush.msra.mxu0 %v563
    %677 = vmatpush.msra.mxu0 %v561
    %678 = vmatmul.f32.gmra.mxu0 %v634
    %v679 = vpop.f32.mrf.mxu0
    %v680 = vadd.f32 0.0, %v679
    %681 = vmatmul.f32.gmra.mxu0 %v637
    %v682 = vpop.f32.mrf.mxu0
    %v683 = vadd.f32 0.0, %v682
    %684 = vdwg.mxu0
    %v685 = vsub.f32 %v605, %v657
    %v686 = vsub.f32 %v628, %v680
    %v687 = vsub.f32 %v608, %v660
    %v688 = vsub.f32 %v631, %v683
    %689 = vmatpush.msra.mxu0 0.0
    %690 = vmatpush.msra.mxu0 0.0
    %691 = vmatpush.msra.mxu0 0.0
    %692 = vmatpush.msra.mxu0 0.0
    %693 = vmatpush.msra.mxu0 0.0
    %694 = vmatpush.msra.mxu0 0.0
    %695 = vmatpush.msra.mxu0 0.0
    %696 = vmatpush.msra.mxu0 0.0
    %697 = vmatpush.msra.mxu0 %v526
    %698 = vmatpush.msra.mxu0 %v524
    %699 = vmatpush.msra.mxu0 %v522
    %700 = vmatpush.msra.mxu0 %v520
    %701 = vmatpush.msra.mxu0 %v518
    %702 = vmatpush.msra.mxu0 %v516
    %703 = vmatpush.msra.mxu0 %v514
    %704 = vmatpush.msra.mxu0 %v512
    %705 = vmatmul.f32.gmra.mxu0 %v634
    %v706 = vpop.f32.mrf.mxu0
    %v707 = vadd.f32 0.0, %v706
    %708 = vmatmul.f32.gmra.mxu0 %v637
    %v709 = vpop.f32.mrf.mxu0
    %v710 = vadd.f32 0.0, %v709
    %711 = vdwg.mxu0
    %712 = vmatpush.msra.mxu0 0.0
    %713 = vmatpush.msra.mxu0 0.0
    %714 = vmatpush.msra.mxu0 0.0
    %715 = vmatpush.msra.mxu0 0.0
    %716 = vmatpush.msra.mxu0 0.0
    %717 = vmatpush.msra.mxu0 0.0
    %718 = vmatpush.msra.mxu0 0.0
    %719 = vmatpush.msra.mxu0 0.0
    %720 = vmatpush.msra.mxu0 %v527
    %721 = vmatpush.msra.mxu0 %v525
    %722 = vmatpush.msra.mxu0 %v523
    %723 = vmatpush.msra.mxu0 %v521
    %724 = vmatpush.msra.mxu0 %v519
    %725 = vmatpush.msra.mxu0 %v517
    %726 = vmatpush.msra.mxu0 %v515
    %727 = vmatpush.msra.mxu0 %v513
    %728 = vmatmul.f32.gmra.mxu0 %v634
    %v729 = vpop.f32.mrf.mxu0
    %v730 = vadd.f32 0.0, %v729
    %731 = vmatmul.f32.gmra.mxu0 %v637
    %v732 = vpop.f32.mrf.mxu0
    %v733 = vadd.f32 0.0, %v732
    %734 = vdwg.mxu0
    %735 = vmatpush.msra.mxu0 0.0
    %736 = vmatpush.msra.mxu0 0.0
    %737 = vmatpush.msra.mxu0 0.0
    %738 = vmatpush.msra.mxu0 0.0
    %739 = vmatpush.msra.mxu0 0.0
    %740 = vmatpush.msra.mxu0 0.0
    %741 = vmatpush.msra.mxu0 0.0
    %742 = vmatpush.msra.mxu0 0.0
    %743 = vmatpush.msra.mxu0 %v574
    %744 = vmatpush.msra.mxu0 %v572
    %745 = vmatpush.msra.mxu0 %v570
    %746 = vmatpush.msra.mxu0 %v568
    %747 = vmatpush.msra.mxu0 %v566
    %748 = vmatpush.msra.mxu0 %v564
    %749 = vmatpush.msra.mxu0 %v562
    %750 = vmatpush.msra.mxu0 %v560
    %751 = vmatmul.f32.gmra.mxu0 %v582
    %v752 = vpop.f32.mrf.mxu0
    %v753 = vadd.f32 %v707, %v752
    %754 = vmatmul.f32.gmra.mxu0 %v585
    %v755 = vpop.f32.mrf.mxu0
    %v756 = vadd.f32 %v710, %v755
    %757 = vdwg.mxu0
    %758 = vmatpush.msra.mxu0 0.0
    %759 = vmatpush.msra.mxu0 0.0
    %760 = vmatpush.msra.mxu0 0.0
    %761 = vmatpush.msra.mxu0 0.0
    %762 = vmatpush.msra.mxu0 0.0
    %763 = vmatpush.msra.mxu0 0.0
    %764 = vmatpush.msra.mxu0 0.0
    %765 = vmatpush.msra.mxu0 0.0
    %766 = vmatpush.msra.mxu0 %v575
    %767 = vmatpush.msra.mxu0 %v573
    %768 = vmatpush.msra.mxu0 %v571
    %769 = vmatpush.msra.mxu0 %v569
    %770 = vmatpush.msra.mxu0 %v567
    %771 = vmatpush.msra.mxu0 %v565
    %772 = vmatpush.msra.mxu0 %v563
    %773 = vmatpush.msra.mxu0 %v561
    %774 = vmatmul.f32.gmra.mxu0 %v582
    %v775 = vpop.f32.mrf.mxu0
    %v776 = vadd.f32 %v730, %v775
    %777 = vmatmul.f32.gmra.mxu0 %v585
    %v778 = vpop.f32.mrf.mxu0
    %v779 = vadd.f32 %v733, %v778
    %780 = vdwg.mxu0
    %v781 = vsub.f32 0.0, %v753
    %v782 = vsub.f32 0.0, %v776
    %v783 = vsub.f32 0.0, %v756
    %v784 = vsub.f32 0.0, %v779
    %785 = vst [vmem:[#allocation2] sm:$0xff] %v685
    %786 = vst [vmem:[#allocation2 + $0x8] sm:$0xff] %v686
    %787 = vst [vmem:[#allocation2 + $0x10] sm:$0xff] %v753
    %788 = vst [vmem:[#allocation2 + $0x18] sm:$0xff] %v776
    %789 = vst [vmem:[#allocation2 + $0x20] sm:$0xff] %v687
    %790 = vst [vmem:[#allocation2 + $0x28] sm:$0xff] %v688
    %791 = vst [vmem:[#allocation2 + $0x30] sm:$0xff] %v756
    %792 = vst [vmem:[#allocation2 + $0x38] sm:$0xff] %v779
    %793 = vst [vmem:[#allocation2 + $0x40] sm:$0xff] %v781
    %794 = vst [vmem:[#allocation2 + $0x48] sm:$0xff] %v782
    %795 = vst [vmem:[#allocation2 + $0x50] sm:$0xff] %v685
    %796 = vst [vmem:[#allocation2 + $0x58] sm:$0xff] %v686
    %797 = vst [vmem:[#allocation2 + $0x60] sm:$0xff] %v783
    %798 = vst [vmem:[#allocation2 + $0x68] sm:$0xff] %v784
    %799 = vst [vmem:[#allocation2 + $0x70] sm:$0xff] %v687
    %800 = vst [vmem:[#allocation2 + $0x78] sm:$0xff] %v688
  $region25: #{decomposable_parameters_forward.1} parent=0 // pred_fallthru
    _
  %v801 = vld [vmem:[%s0] sm:$0xff]
  %s802 = scalar_lea.vmem %s0, 8
  %v803 = vld [vmem:[%s802] sm:$0xff]
  %v804 = vld [vmem:[%s1] sm:$0xff]
  %s805 = scalar_lea.vmem %s1, 8
  %v806 = vld [vmem:[%s805] sm:$0xff]
  %v807 = vlaneseq
  %v808 = vshrl.u32 %v807, 7
  %v809 = vadd.s32 %v808, 8
  %v810 = vadd.s32 %v808, 16
  %v811 = vadd.s32 %v808, 24
  %v812 = vadd.s32 %v808, 32
  %v813 = vadd.s32 %v808, 40
  %v814 = vadd.s32 %v808, 48
  %v815 = vadd.s32 %v808, 56
  %v816 = vlaneseq
  %v817 = vand.u32 %v816, 127
  %v818 = vmul.u32 %v817, 8
  %vm819 = vcmp.ge.s32.totalorder %v808, %v818
  %vm820 = vcmp.ge.s32.totalorder %v809, %v818
  %vm821 = vcmp.ge.s32.totalorder %v810, %v818
  %vm822 = vcmp.ge.s32.totalorder %v811, %v818
  %vm823 = vcmp.ge.s32.totalorder %v812, %v818
  %vm824 = vcmp.ge.s32.totalorder %v813, %v818
  %vm825 = vcmp.ge.s32.totalorder %v814, %v818
  %vm826 = vcmp.ge.s32.totalorder %v815, %v818
  %v827 = vadd.s32 %v818, 8
  %vm828 = vcmp.lt.s32.totalorder %v808, %v827
  %vm829 = vcmp.lt.s32.totalorder %v809, %v827
  %vm830 = vcmp.lt.s32.totalorder %v810, %v827
  %vm831 = vcmp.lt.s32.totalorder %v811, %v827
  %vm832 = vcmp.lt.s32.totalorder %v812, %v827
  %vm833 = vcmp.lt.s32.totalorder %v813, %v827
  %vm834 = vcmp.lt.s32.totalorder %v814, %v827
  %vm835 = vcmp.lt.s32.totalorder %v815, %v827
  %vm836 = vmand %vm819, %vm828
  %vm837 = vmand %vm820, %vm829
  %vm838 = vmand %vm821, %vm830
  %vm839 = vmand %vm822, %vm831
  %vm840 = vmand %vm823, %vm832
  %vm841 = vmand %vm824, %vm833
  %vm842 = vmand %vm825, %vm834
  %vm843 = vmand %vm826, %vm835
  %v844 = vsel %vm836, 1.0, 0.0
  %v845 = vsel %vm837, 1.0, 0.0
  %v846 = vsel %vm838, 1.0, 0.0
  %v847 = vsel %vm839, 1.0, 0.0
  %v848 = vsel %vm840, 1.0, 0.0
  %v849 = vsel %vm841, 1.0, 0.0
  %v850 = vsel %vm842, 1.0, 0.0
  %v851 = vsel %vm843, 1.0, 0.0
  %v852 = vmul.u32 %v808, 4
  %vm853 = vcmp.ge.s32.totalorder %v817, %v852
  %v854 = vadd.s32 %v852, 4
  %vm855 = vcmp.lt.s32.totalorder %v817, %v854
  %vm856 = vmand %vm853, %vm855
  %v857 = vsel %vm856, 1.0, 0.0
  %vm858 = vcmask 64512
  %v860 = vsel %vm858, %v844, 0
  %v863 = vsel %vm858, %v845, 0
  %v866 = vsel %vm858, %v846, 0
  %v869 = vsel %vm858, %v847, 0
  %v872 = vsel %vm858, %v848, 0
  %v875 = vsel %vm858, %v849, 0
  %v878 = vsel %vm858, %v850, 0
  %v881 = vsel %vm858, %v851, 0
  %883 = vmatpush.msra.mxu0 0.0
  %884 = vmatpush.msra.mxu0 0.0
  %885 = vmatpush.msra.mxu0 0.0
  %886 = vmatpush.msra.mxu0 0.0
  %887 = vmatpush.msra.mxu0 0.0
  %888 = vmatpush.msra.mxu0 0.0
  %889 = vmatpush.msra.mxu0 0.0
  %890 = vmatpush.msra.mxu0 0.0
  %891 = vmatpush.msra.mxu0 0.0
  %892 = vmatpush.msra.mxu0 0.0
  %893 = vmatpush.msra.mxu0 0.0
  %894 = vmatpush.msra.mxu0 0.0
  %895 = vmatpush.msra.mxu0 0.0
  %896 = vmatpush.msra.mxu0 0.0
  %897 = vmatpush.msra.mxu0 0.0
  %898 = vmatpush.msra.mxu0 %v801
  %899 = vmatmul.f32.gmra.mxu0 %v860
  %v900 = vpop.f32.mrf.mxu0
  %v901 = vadd.f32 0.0, %v900
  %902 = vmatmul.f32.gmra.mxu0 %v863
  %v903 = vpop.f32.mrf.mxu0
  %v904 = vadd.f32 0.0, %v903
  %905 = vmatmul.f32.gmra.mxu0 %v866
  %v906 = vpop.f32.mrf.mxu0
  %v907 = vadd.f32 0.0, %v906
  %908 = vmatmul.f32.gmra.mxu0 %v869
  %v909 = vpop.f32.mrf.mxu0
  %v910 = vadd.f32 0.0, %v909
  %911 = vmatmul.f32.gmra.mxu0 %v872
  %v912 = vpop.f32.mrf.mxu0
  %v913 = vadd.f32 0.0, %v912
  %914 = vmatmul.f32.gmra.mxu0 %v875
  %v915 = vpop.f32.mrf.mxu0
  %v916 = vadd.f32 0.0, %v915
  %917 = vmatmul.f32.gmra.mxu0 %v878
  %v918 = vpop.f32.mrf.mxu0
  %v919 = vadd.f32 0.0, %v918
  %920 = vmatmul.f32.gmra.mxu0 %v881
  %v921 = vpop.f32.mrf.mxu0
  %v922 = vadd.f32 0.0, %v921
  %923 = vdwg.mxu0
  %vm924 = vcmask 31744
  %v926 = vsel %vm924, %v901, 0
  %v929 = vsel %vm924, %v904, 0
  %v932 = vsel %vm924, %v907, 0
  %v935 = vsel %vm924, %v910, 0
  %v938 = vsel %vm924, %v913, 0
  %v941 = vsel %vm924, %v916, 0
  %v944 = vsel %vm924, %v919, 0
  %v947 = vsel %vm924, %v922, 0
  %vm949 = vcmask 1043456
  %v951 = vsel %vm949, %v857, 0
  %953 = vmatpush.msra.mxu0 0.0
  %954 = vmatpush.msra.mxu0 0.0
  %955 = vmatpush.msra.mxu0 0.0
  %956 = vmatpush.msra.mxu0 0.0
  %957 = vmatpush.msra.mxu0 0.0
  %958 = vmatpush.msra.mxu0 0.0
  %959 = vmatpush.msra.mxu0 0.0
  %960 = vmatpush.msra.mxu0 0.0
  %961 = vmatpush.msra.mxu0 0.0
  %962 = vmatpush.msra.mxu0 0.0
  %963 = vmatpush.msra.mxu0 0.0
  %964 = vmatpush.msra.mxu0 0.0
  %965 = vmatpush.msra.mxu0 0.0
  %966 = vmatpush.msra.mxu0 0.0
  %967 = vmatpush.msra.mxu0 0.0
  %968 = vmatpush.msra.mxu0 %v951
  %969 = vmatmul.f32.gmra.mxu0 %v926
  %v970 = vpop.f32.mrf.mxu0
  %v971 = vadd.f32 0.0, %v970
  %972 = vmatmul.f32.gmra.mxu0 %v929
  %v973 = vpop.f32.mrf.mxu0
  %v974 = vadd.f32 0.0, %v973
  %975 = vmatmul.f32.gmra.mxu0 %v932
  %v976 = vpop.f32.mrf.mxu0
  %v977 = vadd.f32 0.0, %v976
  %978 = vmatmul.f32.gmra.mxu0 %v935
  %v979 = vpop.f32.mrf.mxu0
  %v980 = vadd.f32 0.0, %v979
  %981 = vmatmul.f32.gmra.mxu0 %v938
  %v982 = vpop.f32.mrf.mxu0
  %v983 = vadd.f32 0.0, %v982
  %984 = vmatmul.f32.gmra.mxu0 %v941
  %v985 = vpop.f32.mrf.mxu0
  %v986 = vadd.f32 0.0, %v985
  %987 = vmatmul.f32.gmra.mxu0 %v944
  %v988 = vpop.f32.mrf.mxu0
  %v989 = vadd.f32 0.0, %v988
  %990 = vmatmul.f32.gmra.mxu0 %v947
  %v991 = vpop.f32.mrf.mxu0
  %v992 = vadd.f32 0.0, %v991
  %993 = vdwg.mxu0
  %994 = vmatpush.msra.mxu0 0.0
  %995 = vmatpush.msra.mxu0 0.0
  %996 = vmatpush.msra.mxu0 0.0
  %997 = vmatpush.msra.mxu0 0.0
  %998 = vmatpush.msra.mxu0 0.0
  %999 = vmatpush.msra.mxu0 0.0
  %1000 = vmatpush.msra.mxu0 0.0
  %1001 = vmatpush.msra.mxu0 0.0
  %1002 = vmatpush.msra.mxu0 0.0
  %1003 = vmatpush.msra.mxu0 0.0
  %1004 = vmatpush.msra.mxu0 0.0
  %1005 = vmatpush.msra.mxu0 0.0
  %1006 = vmatpush.msra.mxu0 0.0
  %1007 = vmatpush.msra.mxu0 0.0
  %1008 = vmatpush.msra.mxu0 0.0
  %1009 = vmatpush.msra.mxu0 %v803
  %1010 = vmatmul.f32.gmra.mxu0 %v860
  %v1011 = vpop.f32.mrf.mxu0
  %v1012 = vadd.f32 0.0, %v1011
  %1013 = vmatmul.f32.gmra.mxu0 %v863
  %v1014 = vpop.f32.mrf.mxu0
  %v1015 = vadd.f32 0.0, %v1014
  %1016 = vmatmul.f32.gmra.mxu0 %v866
  %v1017 = vpop.f32.mrf.mxu0
  %v1018 = vadd.f32 0.0, %v1017
  %1019 = vmatmul.f32.gmra.mxu0 %v869
  %v1020 = vpop.f32.mrf.mxu0
  %v1021 = vadd.f32 0.0, %v1020
  %1022 = vmatmul.f32.gmra.mxu0 %v872
  %v1023 = vpop.f32.mrf.mxu0
  %v1024 = vadd.f32 0.0, %v1023
  %1025 = vmatmul.f32.gmra.mxu0 %v875
  %v1026 = vpop.f32.mrf.mxu0
  %v1027 = vadd.f32 0.0, %v1026
  %1028 = vmatmul.f32.gmra.mxu0 %v878
  %v1029 = vpop.f32.mrf.mxu0
  %v1030 = vadd.f32 0.0, %v1029
  %1031 = vmatmul.f32.gmra.mxu0 %v881
  %v1032 = vpop.f32.mrf.mxu0
  %v1033 = vadd.f32 0.0, %v1032
  %1034 = vdwg.mxu0
  %v1036 = vsel %vm924, %v1012, 0
  %v1039 = vsel %vm924, %v1015, 0
  %v1042 = vsel %vm924, %v1018, 0
  %v1045 = vsel %vm924, %v1021, 0
  %v1048 = vsel %vm924, %v1024, 0
  %v1051 = vsel %vm924, %v1027, 0
  %v1054 = vsel %vm924, %v1030, 0
  %v1057 = vsel %vm924, %v1033, 0
  %1059 = vmatpush.msra.mxu0 0.0
  %1060 = vmatpush.msra.mxu0 0.0
  %1061 = vmatpush.msra.mxu0 0.0
  %1062 = vmatpush.msra.mxu0 0.0
  %1063 = vmatpush.msra.mxu0 0.0
  %1064 = vmatpush.msra.mxu0 0.0
  %1065 = vmatpush.msra.mxu0 0.0
  %1066 = vmatpush.msra.mxu0 0.0
  %1067 = vmatpush.msra.mxu0 0.0
  %1068 = vmatpush.msra.mxu0 0.0
  %1069 = vmatpush.msra.mxu0 0.0
  %1070 = vmatpush.msra.mxu0 0.0
  %1071 = vmatpush.msra.mxu0 0.0
  %1072 = vmatpush.msra.mxu0 0.0
  %1073 = vmatpush.msra.mxu0 0.0
  %1074 = vmatpush.msra.mxu0 %v951
  %1075 = vmatmul.f32.gmra.mxu0 %v1036
  %v1076 = vpop.f32.mrf.mxu0
  %v1077 = vadd.f32 0.0, %v1076
  %1078 = vmatmul.f32.gmra.mxu0 %v1039
  %v1079 = vpop.f32.mrf.mxu0
  %v1080 = vadd.f32 0.0, %v1079
  %1081 = vmatmul.f32.gmra.mxu0 %v1042
  %v1082 = vpop.f32.mrf.mxu0
  %v1083 = vadd.f32 0.0, %v1082
  %1084 = vmatmul.f32.gmra.mxu0 %v1045
  %v1085 = vpop.f32.mrf.mxu0
  %v1086 = vadd.f32 0.0, %v1085
  %1087 = vmatmul.f32.gmra.mxu0 %v1048
  %v1088 = vpop.f32.mrf.mxu0
  %v1089 = vadd.f32 0.0, %v1088
  %1090 = vmatmul.f32.gmra.mxu0 %v1051
  %v1091 = vpop.f32.mrf.mxu0
  %v1092 = vadd.f32 0.0, %v1091
  %1093 = vmatmul.f32.gmra.mxu0 %v1054
  %v1094 = vpop.f32.mrf.mxu0
  %v1095 = vadd.f32 0.0, %v1094
  %1096 = vmatmul.f32.gmra.mxu0 %v1057
  %v1097 = vpop.f32.mrf.mxu0
  %v1098 = vadd.f32 0.0, %v1097
  %1099 = vdwg.mxu0
  %1101 = vrot.lane.b32.xlu0 %v804, 4
  %v1102 = vpop.permute.xlu0 %1101
  %1104 = vrot.lane.b32.xlu0 %v804, 8
  %v1105 = vpop.permute.xlu0 %1104
  %1107 = vrot.lane.b32.xlu0 %v804, 12
  %v1108 = vpop.permute.xlu0 %1107
  %v1110 = vsel %vm924, %v804, %v1102
  %v1111 = vsel %vm858, %v1110, %v1105
  %vm1112 = vcmask 97280
  %v1113 = vsel %vm1112, %v1111, %v1108
  %1115 = vrot.lane.b32.xlu0 %v806, 4
  %v1116 = vpop.permute.xlu0 %1115
  %1118 = vrot.lane.b32.xlu0 %v806, 8
  %v1119 = vpop.permute.xlu0 %1118
  %1121 = vrot.lane.b32.xlu0 %v806, 12
  %v1122 = vpop.permute.xlu0 %1121
  %v1124 = vsel %vm924, %v806, %v1116
  %v1125 = vsel %vm858, %v1124, %v1119
  %v1126 = vsel %vm1112, %v1125, %v1122
  %v1127 = vmul.f32 %v971, %v1113
  %v1128 = vmul.f32 %v974, %v1113
  %v1129 = vmul.f32 %v977, %v1113
  %v1130 = vmul.f32 %v980, %v1113
  %v1131 = vmul.f32 %v983, %v1113
  %v1132 = vmul.f32 %v986, %v1113
  %v1133 = vmul.f32 %v989, %v1113
  %v1134 = vmul.f32 %v992, %v1113
  %v1135 = vmul.f32 %v1077, %v1126
  %v1136 = vmul.f32 %v1080, %v1126
  %v1137 = vmul.f32 %v1083, %v1126
  %v1138 = vmul.f32 %v1086, %v1126
  %v1139 = vmul.f32 %v1089, %v1126
  %v1140 = vmul.f32 %v1092, %v1126
  %v1141 = vmul.f32 %v1095, %v1126
  %v1142 = vmul.f32 %v1098, %v1126
  %v1143 = vsub.f32 %v1127, %v1135
  %v1144 = vsub.f32 %v1128, %v1136
  %v1145 = vsub.f32 %v1129, %v1137
  %v1146 = vsub.f32 %v1130, %v1138
  %v1147 = vsub.f32 %v1131, %v1139
  %v1148 = vsub.f32 %v1132, %v1140
  %v1149 = vsub.f32 %v1133, %v1141
  %v1150 = vsub.f32 %v1134, %v1142
  %v1151 = vmul.f32 %v971, %v1126
  %v1152 = vmul.f32 %v974, %v1126
  %v1153 = vmul.f32 %v977, %v1126
  %v1154 = vmul.f32 %v980, %v1126
  %v1155 = vmul.f32 %v983, %v1126
  %v1156 = vmul.f32 %v986, %v1126
  %v1157 = vmul.f32 %v989, %v1126
  %v1158 = vmul.f32 %v992, %v1126
  %v1159 = vmul.f32 %v1077, %v1113
  %v1160 = vmul.f32 %v1080, %v1113
  %v1161 = vmul.f32 %v1083, %v1113
  %v1162 = vmul.f32 %v1086, %v1113
  %v1163 = vmul.f32 %v1089, %v1113
  %v1164 = vmul.f32 %v1092, %v1113
  %v1165 = vmul.f32 %v1095, %v1113
  %v1166 = vmul.f32 %v1098, %v1113
  %v1167 = vadd.f32 %v1151, %v1159
  %v1168 = vadd.f32 %v1152, %v1160
  %v1169 = vadd.f32 %v1153, %v1161
  %v1170 = vadd.f32 %v1154, %v1162
  %v1171 = vadd.f32 %v1155, %v1163
  %v1172 = vadd.f32 %v1156, %v1164
  %v1173 = vadd.f32 %v1157, %v1165
  %v1174 = vadd.f32 %v1158, %v1166
  %1183 = vrot.lane.b32.xlu0 %v1167, 16
  %v1184 = vpop.permute.xlu0 %1183
  %1185 = vrot.lane.b32.xlu0 %v1168, 16
  %v1186 = vpop.permute.xlu0 %1185
  %1187 = vrot.lane.b32.xlu0 %v1169, 16
  %v1188 = vpop.permute.xlu0 %1187
  %1189 = vrot.lane.b32.xlu0 %v1170, 16
  %v1190 = vpop.permute.xlu0 %1189
  %1191 = vrot.lane.b32.xlu0 %v1171, 16
  %v1192 = vpop.permute.xlu0 %1191
  %1193 = vrot.lane.b32.xlu0 %v1172, 16
  %v1194 = vpop.permute.xlu0 %1193
  %1195 = vrot.lane.b32.xlu0 %v1173, 16
  %v1196 = vpop.permute.xlu0 %1195
  %1197 = vrot.lane.b32.xlu0 %v1174, 16
  %v1198 = vpop.permute.xlu0 %1197
  %vm1207 = vcmask 130048
  %v1208 = vsel %vm1207, %v1143, %v1184
  %v1209 = vsel %vm1207, %v1144, %v1186
  %v1210 = vsel %vm1207, %v1145, %v1188
  %v1211 = vsel %vm1207, %v1146, %v1190
  %v1212 = vsel %vm1207, %v1147, %v1192
  %v1213 = vsel %vm1207, %v1148, %v1194
  %v1214 = vsel %vm1207, %v1149, %v1196
  %v1215 = vsel %vm1207, %v1150, %v1198
  %v1216 = vld [vmem:[#allocation2] sm:$0xff]
  %v1217 = vld [vmem:[#allocation2 + $0x8] sm:$0xff]
  %v1218 = vld [vmem:[#allocation2 + $0x10] sm:$0xff]
  %v1219 = vld [vmem:[#allocation2 + $0x18] sm:$0xff]
  %v1220 = vld [vmem:[#allocation2 + $0x20] sm:$0xff]
  %v1221 = vld [vmem:[#allocation2 + $0x28] sm:$0xff]
  %v1222 = vld [vmem:[#allocation2 + $0x30] sm:$0xff]
  %v1223 = vld [vmem:[#allocation2 + $0x38] sm:$0xff]
  %v1224 = vld [vmem:[#allocation2 + $0x40] sm:$0xff]
  %v1225 = vld [vmem:[#allocation2 + $0x48] sm:$0xff]
  %v1226 = vld [vmem:[#allocation2 + $0x50] sm:$0xff]
  %v1227 = vld [vmem:[#allocation2 + $0x58] sm:$0xff]
  %v1228 = vld [vmem:[#allocation2 + $0x60] sm:$0xff]
  %v1229 = vld [vmem:[#allocation2 + $0x68] sm:$0xff]
  %v1230 = vld [vmem:[#allocation2 + $0x70] sm:$0xff]
  %v1231 = vld [vmem:[#allocation2 + $0x78] sm:$0xff]
  %vm1232 = vcmask 261120
  %v1234 = vsel %vm1232, %v1208, 0
  %v1237 = vsel %vm1232, %v1209, 0
  %v1240 = vsel %vm1232, %v1210, 0
  %v1243 = vsel %vm1232, %v1211, 0
  %v1246 = vsel %vm1232, %v1212, 0
  %v1249 = vsel %vm1232, %v1213, 0
  %v1252 = vsel %vm1232, %v1214, 0
  %v1255 = vsel %vm1232, %v1215, 0
  %1257 = vmatpush.msra.mxu0 0.0
  %1258 = vmatpush.msra.mxu0 0.0
  %1259 = vmatpush.msra.mxu0 0.0
  %1260 = vmatpush.msra.mxu0 0.0
  %1261 = vmatpush.msra.mxu0 0.0
  %1262 = vmatpush.msra.mxu0 0.0
  %1263 = vmatpush.msra.mxu0 0.0
  %1264 = vmatpush.msra.mxu0 0.0
  %1265 = vmatpush.msra.mxu0 0.0
  %1266 = vmatpush.msra.mxu0 0.0
  %1267 = vmatpush.msra.mxu0 0.0
  %1268 = vmatpush.msra.mxu0 0.0
  %1269 = vmatpush.msra.mxu0 %v1228
  %1270 = vmatpush.msra.mxu0 %v1224
  %1271 = vmatpush.msra.mxu0 %v1220
  %1272 = vmatpush.msra.mxu0 %v1216
  %1273 = vmatmul.f32.gmra.mxu0 %v1234
  %v1274 = vpop.f32.mrf.mxu0
  %v1275 = vadd.f32 0.0, %v1274
  %1276 = vmatmul.f32.gmra.mxu0 %v1237
  %v1277 = vpop.f32.mrf.mxu0
  %v1278 = vadd.f32 0.0, %v1277
  %1279 = vmatmul.f32.gmra.mxu0 %v1240
  %v1280 = vpop.f32.mrf.mxu0
  %v1281 = vadd.f32 0.0, %v1280
  %1282 = vmatmul.f32.gmra.mxu0 %v1243
  %v1283 = vpop.f32.mrf.mxu0
  %v1284 = vadd.f32 0.0, %v1283
  %1285 = vmatmul.f32.gmra.mxu0 %v1246
  %v1286 = vpop.f32.mrf.mxu0
  %v1287 = vadd.f32 0.0, %v1286
  %1288 = vmatmul.f32.gmra.mxu0 %v1249
  %v1289 = vpop.f32.mrf.mxu0
  %v1290 = vadd.f32 0.0, %v1289
  %1291 = vmatmul.f32.gmra.mxu0 %v1252
  %v1292 = vpop.f32.mrf.mxu0
  %v1293 = vadd.f32 0.0, %v1292
  %1294 = vmatmul.f32.gmra.mxu0 %v1255
  %v1295 = vpop.f32.mrf.mxu0
  %v1296 = vadd.f32 0.0, %v1295
  %1297 = vdwg.mxu0
  %1298 = vmatpush.msra.mxu0 0.0
  %1299 = vmatpush.msra.mxu0 0.0
  %1300 = vmatpush.msra.mxu0 0.0
  %1301 = vmatpush.msra.mxu0 0.0
  %1302 = vmatpush.msra.mxu0 0.0
  %1303 = vmatpush.msra.mxu0 0.0
  %1304 = vmatpush.msra.mxu0 0.0
  %1305 = vmatpush.msra.mxu0 0.0
  %1306 = vmatpush.msra.mxu0 0.0
  %1307 = vmatpush.msra.mxu0 0.0
  %1308 = vmatpush.msra.mxu0 0.0
  %1309 = vmatpush.msra.mxu0 0.0
  %1310 = vmatpush.msra.mxu0 %v1229
  %1311 = vmatpush.msra.mxu0 %v1225
  %1312 = vmatpush.msra.mxu0 %v1221
  %1313 = vmatpush.msra.mxu0 %v1217
  %1314 = vmatmul.f32.gmra.mxu0 %v1234
  %v1315 = vpop.f32.mrf.mxu0
  %v1316 = vadd.f32 0.0, %v1315
  %1317 = vmatmul.f32.gmra.mxu0 %v1237
  %v1318 = vpop.f32.mrf.mxu0
  %v1319 = vadd.f32 0.0, %v1318
  %1320 = vmatmul.f32.gmra.mxu0 %v1240
  %v1321 = vpop.f32.mrf.mxu0
  %v1322 = vadd.f32 0.0, %v1321
  %1323 = vmatmul.f32.gmra.mxu0 %v1243
  %v1324 = vpop.f32.mrf.mxu0
  %v1325 = vadd.f32 0.0, %v1324
  %1326 = vmatmul.f32.gmra.mxu0 %v1246
  %v1327 = vpop.f32.mrf.mxu0
  %v1328 = vadd.f32 0.0, %v1327
  %1329 = vmatmul.f32.gmra.mxu0 %v1249
  %v1330 = vpop.f32.mrf.mxu0
  %v1331 = vadd.f32 0.0, %v1330
  %1332 = vmatmul.f32.gmra.mxu0 %v1252
  %v1333 = vpop.f32.mrf.mxu0
  %v1334 = vadd.f32 0.0, %v1333
  %1335 = vmatmul.f32.gmra.mxu0 %v1255
  %v1336 = vpop.f32.mrf.mxu0
  %v1337 = vadd.f32 0.0, %v1336
  %1338 = vdwg.mxu0
  %1339 = vmatpush.msra.mxu0 0.0
  %1340 = vmatpush.msra.mxu0 0.0
  %1341 = vmatpush.msra.mxu0 0.0
  %1342 = vmatpush.msra.mxu0 0.0
  %1343 = vmatpush.msra.mxu0 0.0
  %1344 = vmatpush.msra.mxu0 0.0
  %1345 = vmatpush.msra.mxu0 0.0
  %1346 = vmatpush.msra.mxu0 0.0
  %1347 = vmatpush.msra.mxu0 0.0
  %1348 = vmatpush.msra.mxu0 0.0
  %1349 = vmatpush.msra.mxu0 0.0
  %1350 = vmatpush.msra.mxu0 0.0
  %1351 = vmatpush.msra.mxu0 %v1230
  %1352 = vmatpush.msra.mxu0 %v1226
  %1353 = vmatpush.msra.mxu0 %v1222
  %1354 = vmatpush.msra.mxu0 %v1218
  %1355 = vmatmul.f32.gmra.mxu0 %v1234
  %v1356 = vpop.f32.mrf.mxu0
  %v1357 = vadd.f32 0.0, %v1356
  %1358 = vmatmul.f32.gmra.mxu0 %v1237
  %v1359 = vpop.f32.mrf.mxu0
  %v1360 = vadd.f32 0.0, %v1359
  %1361 = vmatmul.f32.gmra.mxu0 %v1240
  %v1362 = vpop.f32.mrf.mxu0
  %v1363 = vadd.f32 0.0, %v1362
  %1364 = vmatmul.f32.gmra.mxu0 %v1243
  %v1365 = vpop.f32.mrf.mxu0
  %v1366 = vadd.f32 0.0, %v1365
  %1367 = vmatmul.f32.gmra.mxu0 %v1246
  %v1368 = vpop.f32.mrf.mxu0
  %v1369 = vadd.f32 0.0, %v1368
  %1370 = vmatmul.f32.gmra.mxu0 %v1249
  %v1371 = vpop.f32.mrf.mxu0
  %v1372 = vadd.f32 0.0, %v1371
  %1373 = vmatmul.f32.gmra.mxu0 %v1252
  %v1374 = vpop.f32.mrf.mxu0
  %v1375 = vadd.f32 0.0, %v1374
  %1376 = vmatmul.f32.gmra.mxu0 %v1255
  %v1377 = vpop.f32.mrf.mxu0
  %v1378 = vadd.f32 0.0, %v1377
  %1379 = vdwg.mxu0
  %1380 = vmatpush.msra.mxu0 0.0
  %1381 = vmatpush.msra.mxu0 0.0
  %1382 = vmatpush.msra.mxu0 0.0
  %1383 = vmatpush.msra.mxu0 0.0
  %1384 = vmatpush.msra.mxu0 0.0
  %1385 = vmatpush.msra.mxu0 0.0
  %1386 = vmatpush.msra.mxu0 0.0
  %1387 = vmatpush.msra.mxu0 0.0
  %1388 = vmatpush.msra.mxu0 0.0
  %1389 = vmatpush.msra.mxu0 0.0
  %1390 = vmatpush.msra.mxu0 0.0
  %1391 = vmatpush.msra.mxu0 0.0
  %1392 = vmatpush.msra.mxu0 %v1231
  %1393 = vmatpush.msra.mxu0 %v1227
  %1394 = vmatpush.msra.mxu0 %v1223
  %1395 = vmatpush.msra.mxu0 %v1219
  %1396 = vmatmul.f32.gmra.mxu0 %v1234
  %v1397 = vpop.f32.mrf.mxu0
  %v1398 = vadd.f32 0.0, %v1397
  %1399 = vmatmul.f32.gmra.mxu0 %v1237
  %v1400 = vpop.f32.mrf.mxu0
  %v1401 = vadd.f32 0.0, %v1400
  %1402 = vmatmul.f32.gmra.mxu0 %v1240
  %v1403 = vpop.f32.mrf.mxu0
  %v1404 = vadd.f32 0.0, %v1403
  %1405 = vmatmul.f32.gmra.mxu0 %v1243
  %v1406 = vpop.f32.mrf.mxu0
  %v1407 = vadd.f32 0.0, %v1406
  %1408 = vmatmul.f32.gmra.mxu0 %v1246
  %v1409 = vpop.f32.mrf.mxu0
  %v1410 = vadd.f32 0.0, %v1409
  %1411 = vmatmul.f32.gmra.mxu0 %v1249
  %v1412 = vpop.f32.mrf.mxu0
  %v1413 = vadd.f32 0.0, %v1412
  %1414 = vmatmul.f32.gmra.mxu0 %v1252
  %v1415 = vpop.f32.mrf.mxu0
  %v1416 = vadd.f32 0.0, %v1415
  %1417 = vmatmul.f32.gmra.mxu0 %v1255
  %v1418 = vpop.f32.mrf.mxu0
  %v1419 = vadd.f32 0.0, %v1418
  %1420 = vdwg.mxu0
  %1421 = vst [vmem:[%s5] sm:$0xff] %v1275
  %1422 = vst [vmem:[%s5 + $0x8] sm:$0xff] %v1316
  %1423 = vst [vmem:[%s5 + $0x10] sm:$0xff] %v1357
  %1424 = vst [vmem:[%s5 + $0x18] sm:$0xff] %v1398
  %1425 = vst [vmem:[%s5 + $0x20] sm:$0xff] %v1278
  %1426 = vst [vmem:[%s5 + $0x28] sm:$0xff] %v1319
  %1427 = vst [vmem:[%s5 + $0x30] sm:$0xff] %v1360
  %1428 = vst [vmem:[%s5 + $0x38] sm:$0xff] %v1401
  %1429 = vst [vmem:[%s5 + $0x40] sm:$0xff] %v1281
  %1430 = vst [vmem:[%s5 + $0x48] sm:$0xff] %v1322
  %1431 = vst [vmem:[%s5 + $0x50] sm:$0xff] %v1363
  %1432 = vst [vmem:[%s5 + $0x58] sm:$0xff] %v1404
  %1433 = vst [vmem:[%s5 + $0x60] sm:$0xff] %v1284
  %1434 = vst [vmem:[%s5 + $0x68] sm:$0xff] %v1325
  %1435 = vst [vmem:[%s5 + $0x70] sm:$0xff] %v1366
  %1436 = vst [vmem:[%s5 + $0x78] sm:$0xff] %v1407
  %1437 = vst [vmem:[%s5 + $0x80] sm:$0xff] %v1287
  %1438 = vst [vmem:[%s5 + $0x88] sm:$0xff] %v1328
  %1439 = vst [vmem:[%s5 + $0x90] sm:$0xff] %v1369
  %1440 = vst [vmem:[%s5 + $0x98] sm:$0xff] %v1410
  %1441 = vst [vmem:[%s5 + $0xa0] sm:$0xff] %v1290
  %1442 = vst [vmem:[%s5 + $0xa8] sm:$0xff] %v1331
  %1443 = vst [vmem:[%s5 + $0xb0] sm:$0xff] %v1372
  %1444 = vst [vmem:[%s5 + $0xb8] sm:$0xff] %v1413
  %1445 = vst [vmem:[%s5 + $0xc0] sm:$0xff] %v1293
  %1446 = vst [vmem:[%s5 + $0xc8] sm:$0xff] %v1334
  %1447 = vst [vmem:[%s5 + $0xd0] sm:$0xff] %v1375
  %1448 = vst [vmem:[%s5 + $0xd8] sm:$0xff] %v1416
  %1449 = vst [vmem:[%s5 + $0xe0] sm:$0xff] %v1296
  %1450 = vst [vmem:[%s5 + $0xe8] sm:$0xff] %v1337
  %1451 = vst [vmem:[%s5 + $0xf0] sm:$0xff] %v1378
  %1452 = vst [vmem:[%s5 + $0xf8] sm:$0xff] %v1419
  // Predicated region
  $region26: #{decomposable_parameters_forward.1} parent=0 // pred_check
    _
  $region27: #{decomposable_parameters_forward.1} parent=0 // pred_check_branch
    %1454 = sbr.rel (0) target = $region29
  $region28: #{decomposable_parameters_forward.1} parent=0 // pred_region
    _
  $region29: #{decomposable_parameters_forward.1} parent=0 // pred_fallthru
    _
  // Predicated region
  $region30: #{decomposable_parameters_forward.1} parent=0 // pred_check
    _
  $region31: #{decomposable_parameters_forward.1} parent=0 // pred_check_branch
    %1456 = sbr.rel (0) target = $region33
  $region32: #{decomposable_parameters_forward.1} parent=0 // pred_region
    _
  $region33: #{decomposable_parameters_forward.1} parent=0 // pred_fallthru
    _

</llo_original>
